<compile_context>
chip_gen: v5e
topology: v5e:2x2
jax: 0.10.0
libtpu: 0.0.40
codegen_flags: <defaults>
</compile_context>

<pallas_src>
import functools

import jax
import jax.numpy as jnp
from jax.experimental import pallas as pl
from jax.experimental.pallas import tpu as pltpu

BN_EPS = 1e-5


def projection_head_kernel(
    x_ref,                    # [B, dim_in]        bf16 (resident)
    w1_ref,                   # [dim_in, TN]       bf16 (phase-1 column tile)
    g1_ref, be1_ref,          # [1, DHp]           f32  (resident, sliced in-kernel)
    w2_ref,                   # [DHp, TN]          bf16 (phase-2 column tile)
    g2_ref, be2_ref,          # [1, DHp]           f32  (resident, sliced in-kernel)
    w3_ref,                   # [TN, DOp]          bf16 (phase-2 row tile)
    b3_ref,                   # [1, DOp]           f32  (resident)
    o_ref,                    # [B, DOp]           f32
    a1_ref,                   # [B, DHp]           bf16 scratch (phase-1 activations)
    acc_ref,                  # [B, DOp]           f32 scratch (linear3 accumulator)
    *, num_tiles, tn,
):
    n = pl.program_id(0)

    # ---------------- phase 1: linear1 tile -> BN1 -> ReLU -> scratch ----------
    @pl.when(n < num_tiles)
    def _phase1():
        col = pl.multiple_of(n * tn, 128)
        # bias-free linear1: a per-feature constant is cancelled by BN1's mean sub.
        h1 = jnp.dot(x_ref[...], w1_ref[...], preferred_element_type=jnp.float32)
        mean1 = jnp.mean(h1, axis=0, keepdims=True)
        var1 = jnp.mean(jnp.square(h1 - mean1), axis=0, keepdims=True)
        scale1 = g1_ref[:, pl.ds(col, tn)] * jax.lax.rsqrt(var1 + BN_EPS)
        shift1 = be1_ref[:, pl.ds(col, tn)] - mean1 * scale1
        a1 = jnp.maximum(h1 * scale1 + shift1, 0.0)
        a1_ref[:, pl.ds(col, tn)] = a1.astype(a1_ref.dtype)   # write-once, no RMW

    # ------ phase 2: linear2 column tile -> BN2 -> ReLU -> linear3 partial -----
    @pl.when(n >= num_tiles)
    def _phase2():
        j = n - num_tiles
        col = pl.multiple_of(j * tn, 128)
        # bias-free linear2 (cancelled by BN2); full-K contraction vs bf16 scratch.
        h2 = jnp.dot(a1_ref[...], w2_ref[...], preferred_element_type=jnp.float32)
        mean2 = jnp.mean(h2, axis=0, keepdims=True)
        var2 = jnp.mean(jnp.square(h2 - mean2), axis=0, keepdims=True)
        scale2 = g2_ref[:, pl.ds(col, tn)] * jax.lax.rsqrt(var2 + BN_EPS)
        shift2 = be2_ref[:, pl.ds(col, tn)] - mean2 * scale2
        a2 = jnp.maximum(h2 * scale2 + shift2, 0.0)
        partial = jnp.dot(a2.astype(jnp.bfloat16), w3_ref[...],
                          preferred_element_type=jnp.float32)

        @pl.when(j == 0)
        def _init():
            acc_ref[...] = partial + b3_ref[...]

        @pl.when(j > 0)
        def _accumulate():
            acc_ref[...] += partial

        @pl.when(n == 2 * num_tiles - 1)
        def _write():
            o_ref[...] = acc_ref[...].astype(o_ref.dtype)


# --------------------------------------------------------------------------- #
# Host-side configuration helpers
# --------------------------------------------------------------------------- #
def _device_vmem_capacity_bytes():
    try:
        return int(pltpu.get_tpu_info().vmem_capacity_bytes)
    except Exception:
        return 64 << 20  # conservative default (v7x per-core VMEM)


def _vmem_footprint_bytes(B, dim_in, dh_p, dim_out_p, tn, single_buffer_residents):
    bf16, f32 = 2, 4
    r = 1 if single_buffer_residents else 2
    return int(
        r * B * dim_in * bf16            # x (resident)
        + 2 * dim_in * tn * bf16         # w1 column tile (double-buffered)
        + r * 2 * dh_p * f32             # gamma1, beta1 (resident full width)
        + 2 * dh_p * tn * bf16           # w2 column tile (double-buffered)
        + r * 2 * dh_p * f32             # gamma2, beta2
        + 2 * tn * dim_out_p * bf16      # w3 row tile (double-buffered)
        + r * dim_out_p * f32            # b3
        + r * B * dim_out_p * f32        # output (resident)
        + B * dh_p * bf16                # a1 activation scratch
        + B * dim_out_p * f32            # linear3 accumulator scratch
    )


def _choose_hidden_tile(B, dim_in, dim_hidden, dim_out_p, vmem_budget):
    """Pick hidden tile tn (>=256 preferred, never below the lane-aligned minimum)
    and the zero-padded hidden size dh_p, respecting the device VMEM budget."""
    cands = []
    if dim_hidden > 512:
        for t in (512, 384, 256):            # exact divisors first (no padding)
            if dim_hidden % t == 0:
                cands.append(t)
        cands += [512, 256]                  # ragged: pad last tile with zeros
    else:
        cands.append(((dim_hidden + 127) // 128) * 128)  # single lane-aligned tile
    for tn in cands:
        dh_p = ((dim_hidden + tn - 1) // tn) * tn
        if _vmem_footprint_bytes(B, dim_in, dh_p, dim_out_p, tn, True) <= vmem_budget:
            return tn, dh_p
    raise ValueError(
        f"ProjectionHead tiling does not fit the VMEM budget ({vmem_budget} bytes) "
        f"even at tn=256 (B={B}, dim_in={dim_in}, dim_hidden={dim_hidden}); "
        "reduce the batch size or tile the batch dimension externally.")


# --------------------------------------------------------------------------- #
# Wrapper
# --------------------------------------------------------------------------- #
def projection_head(x, params):
    """x: [B, dim_in] float32. params: dict of weights (see init_params)."""
    B, dim_in = x.shape
    dim_hidden = params["w1"].shape[1]
    dim_out = params["w3"].shape[1]

    dim_out_p = ((dim_out + 127) // 128) * 128        # lane-dense output
    device_vmem = _device_vmem_capacity_bytes()
    tn, dh_p = _choose_hidden_tile(B, dim_in, dim_hidden, dim_out_p,
                                   device_vmem - (16 << 20))
    num_tiles = dh_p // tn
    pad_h = dh_p - dim_hidden
    pad_o = dim_out_p - dim_out

    # bf16 MXU operands; BN params / biases stay f32.
    xb = x.astype(jnp.bfloat16)
    w1 = params["w1"].astype(jnp.bfloat16)
    w2 = params["w2"].astype(jnp.bfloat16)
    w3 = params["w3"].astype(jnp.bfloat16)
    g1, be1 = params["g1"], params["be1"]
    g2, be2 = params["g2"], params["be2"]
    b3 = params["b3"]
    if pad_h:
        # Zero-padded hidden features provably produce zero activations/outputs.
        w1 = jnp.pad(w1, ((0, 0), (0, pad_h)))
        w2 = jnp.pad(w2, ((0, pad_h), (0, pad_h)))
        w3 = jnp.pad(w3, ((0, pad_h), (0, 0)))
        g1 = jnp.pad(g1, ((0, 0), (0, pad_h)))
        be1 = jnp.pad(be1, ((0, 0), (0, pad_h)))
        g2 = jnp.pad(g2, ((0, 0), (0, pad_h)))
        be2 = jnp.pad(be2, ((0, 0), (0, pad_h)))
    if pad_o:
        w3 = jnp.pad(w3, ((0, 0), (0, pad_o)))
        b3 = jnp.pad(b3, ((0, 0), (0, pad_o)))

    kernel = functools.partial(projection_head_kernel, num_tiles=num_tiles, tn=tn)

    def build_and_run(single_buffer):
        def spec(shape, imap, resident=False):
            if resident and single_buffer:
                return pl.BlockSpec(shape, imap, pipeline_mode=pl.Buffered(1))
            return pl.BlockSpec(shape, imap)

        vmem_limit = min(
            _vmem_footprint_bytes(B, dim_in, dh_p, dim_out_p, tn, single_buffer)
            + (8 << 20),
            device_vmem,
        )

        grid_spec = pltpu.PrefetchScalarGridSpec(
            num_scalar_prefetch=0,
            grid=(2 * num_tiles,),
            in_specs=[
                spec((B, dim_in), lambda n: (0, 0), resident=True),                   # x
                spec((dim_in, tn), lambda n: (0, jnp.minimum(n, num_tiles - 1))),     # w1 col tile
                spec((1, dh_p), lambda n: (0, 0), resident=True),                     # gamma1
                spec((1, dh_p), lambda n: (0, 0), resident=True),                     # beta1
                spec((dh_p, tn), lambda n: (0, jnp.maximum(n - num_tiles, 0))),       # w2 col tile
                spec((1, dh_p), lambda n: (0, 0), resident=True),                     # gamma2
                spec((1, dh_p), lambda n: (0, 0), resident=True),                     # beta2
                spec((tn, dim_out_p), lambda n: (jnp.maximum(n - num_tiles, 0), 0)),  # w3 row tile
                spec((1, dim_out_p), lambda n: (0, 0), resident=True),                # b3
            ],
            out_specs=spec((B, dim_out_p), lambda n: (0, 0), resident=True),
            scratch_shapes=[
                pltpu.VMEM((B, dh_p), jnp.bfloat16),       # a1 activations (write-once)
                pltpu.VMEM((B, dim_out_p), jnp.float32),   # linear3 accumulator
            ],
        )
        return pl.pallas_call(
            kernel,
            out_shape=jax.ShapeDtypeStruct((B, dim_out_p), jnp.float32),
            grid_spec=grid_spec,
            compiler_params=pltpu.CompilerParams(
                dimension_semantics=("arbitrary",),
                vmem_limit_bytes=vmem_limit,
            ),
        )(xb, w1, g1, be1, w2, g2, be2, w3, b3)

    try:
        out_p = build_and_run(single_buffer=True)
    except Exception:
        # pipeline_mode=pl.Buffered(1) unsupported on this jax version/backend;
        # fall back to default double-buffering (identical results, more VMEM).
        out_p = build_and_run(single_buffer=False)

    return out_p[:, :dim_out] if pad_o else out_p


# --------------------------------------------------------------------------- #
# Parameters & reference
# --------------------------------------------------------------------------- #
def init_params(key, dim_in, dim_hidden, dim_out):
    """Deterministic synthetic parameters (shapes match nn.Linear / nn.BatchNorm1d)."""
    ks = jax.random.split(key, 6)

    def linear_init(kw, kb, fan_in, fan_out):
        bound = 1.0 / jnp.sqrt(fan_in)
        w = jax.random.uniform(kw, (fan_in, fan_out), jnp.float32, -bound, bound)
        b = jax.random.uniform(kb, (1, fan_out), jnp.float32, -bound, bound)
        return w, b

    w1, b1 = linear_init(ks[0], ks[1], dim_in, dim_hidden)
    w2, b2 = linear_init(ks[2], ks[3], dim_hidden, dim_hidden)
    w3, b3 = linear_init(ks[4], ks[5], dim_hidden, dim_out)

    g1 = jnp.ones((1, dim_hidden), jnp.float32)
    be1 = jnp.zeros((1, dim_hidden), jnp.float32)
    g2 = jnp.ones((1, dim_hidden), jnp.float32)
    be2 = jnp.zeros((1, dim_hidden), jnp.float32)

    return {
        "w1": w1, "b1": b1, "g1": g1, "be1": be1,
        "w2": w2, "b2": b2, "g2": g2, "be2": be2,
        "w3": w3, "b3": b3,
    }


def reference(x, p):
    """Plain-JAX f32 reference of the PyTorch forward (training-mode BN; b1/b2 kept —
    they are exactly cancelled by BN, so the bias-free kernel matches)."""
    def bn_relu(h, g, be):
        m = jnp.mean(h, axis=0, keepdims=True)
        v = jnp.mean((h - m) ** 2, axis=0, keepdims=True)
        return jnp.maximum((h - m) / jnp.sqrt(v + BN_EPS) * g + be, 0.0)

    h = x @ p["w1"] + p["b1"]
    h = bn_relu(h, p["g1"], p["be1"])
    h = h @ p["w2"] + p["b2"]
    h = bn_relu(h, p["g2"], p["be2"])
    return h @ p["w3"] + p["b3"]


if __name__ == "__main__":
    # Small shapes consistent with the module (dim_in / dim_hidden / dim_out scaled down).
    B, dim_in, dim_hidden, dim_out = 8, 32, 32, 16

    key = jax.random.PRNGKey(0)
    kx, kp = jax.random.split(key)
    x = jax.random.normal(kx, (B, dim_in), jnp.float32)
    params = init_params(kp, dim_in, dim_hidden, dim_out)

    out = jax.block_until_ready(projection_head(x, params))

    ref = reference(x, params)
    assert out.shape == (B, dim_out)
    # bf16 MXU operands -> looser tolerance vs the f32 reference.
    assert jnp.allclose(out, ref, atol=5e-2, rtol=5e-2), "mismatch vs reference"

    print("KERNEL_OK")
</pallas_src>

<mosaic_0001>
module attributes {stable_mosaic.version = 11 : i64} {
  func.func @projection_head_kernel(%arg0: i32, %arg1: memref<8x32xbf16, #tpu.memory_space<vmem>>, %arg2: memref<32x128xbf16, #tpu.memory_space<vmem>>, %arg3: memref<1x128xf32, #tpu.memory_space<vmem>>, %arg4: memref<1x128xf32, #tpu.memory_space<vmem>>, %arg5: memref<128x128xbf16, #tpu.memory_space<vmem>>, %arg6: memref<1x128xf32, #tpu.memory_space<vmem>>, %arg7: memref<1x128xf32, #tpu.memory_space<vmem>>, %arg8: memref<128x128xbf16, #tpu.memory_space<vmem>>, %arg9: memref<1x128xf32, #tpu.memory_space<vmem>>, %arg10: memref<8x128xf32, #tpu.memory_space<vmem>>, %arg11: memref<8x128xbf16, #tpu.memory_space<vmem>>, %arg12: memref<8x128xf32, #tpu.memory_space<vmem>>) attributes {dimension_semantics = [#tpu.dimension_semantics<arbitrary>], iteration_bounds = array<i64: 2>, scalar_prefetch = 0 : i64, scratch_operands = 2 : i64, tpu.core_type = #tpu.core_type<tc>, window_params = [{pipeline_mode = #tpu.pipeline_mode<synchronous>, transform_indices = @transform_0, window_bounds = array<i64: 8, 32>}, {transform_indices = @transform_1, window_bounds = array<i64: 32, 128>}, {pipeline_mode = #tpu.pipeline_mode<synchronous>, transform_indices = @transform_2, window_bounds = array<i64: 1, 128>}, {pipeline_mode = #tpu.pipeline_mode<synchronous>, transform_indices = @transform_3, window_bounds = array<i64: 1, 128>}, {transform_indices = @transform_4, window_bounds = array<i64: 128, 128>}, {pipeline_mode = #tpu.pipeline_mode<synchronous>, transform_indices = @transform_5, window_bounds = array<i64: 1, 128>}, {pipeline_mode = #tpu.pipeline_mode<synchronous>, transform_indices = @transform_6, window_bounds = array<i64: 1, 128>}, {transform_indices = @transform_7, window_bounds = array<i64: 128, 128>}, {pipeline_mode = #tpu.pipeline_mode<synchronous>, transform_indices = @transform_8, window_bounds = array<i64: 1, 128>}, {pipeline_mode = #tpu.pipeline_mode<synchronous>, transform_indices = @transform_9, window_bounds = array<i64: 8, 128>}]} {
    %c1_i32 = arith.constant 1 : i32
    %0 = arith.cmpi slt, %arg0, %c1_i32 : i32
    %1 = arith.extui %0 : i1 to i32
    %c0_i32 = arith.constant 0 : i32
    %2 = arith.cmpi ne, %1, %c0_i32 : i32
    scf.if %2 {
      %c128_i32 = arith.constant 128 : i32
      %6 = arith.muli %arg0, %c128_i32 : i32
      %7 = tpu.assume_multiple %6, 128 : i32
      %c0 = arith.constant 0 : index
      %c0_2 = arith.constant 0 : index
      %8 = vector.load %arg1[%c0, %c0_2] : memref<8x32xbf16, #tpu.memory_space<vmem>>, vector<8x32xbf16>
      %c0_3 = arith.constant 0 : index
      %c0_4 = arith.constant 0 : index
      %9 = vector.load %arg2[%c0_3, %c0_4] : memref<32x128xbf16, #tpu.memory_space<vmem>>, vector<32x128xbf16>
      %cst = arith.constant dense<0.000000e+00> : vector<8x128xf32>
      %10 = tpu.matmul %8, %9, %cst {dimension_numbers = #tpu.dot_dimension_numbers<[1], [0], [0], [1], [0, 0, 1, 1], [], []>} : vector<8x32xbf16>, vector<32x128xbf16>, vector<8x128xf32> -> vector<8x128xf32>
      %cst_5 = arith.constant dense<0.000000e+00> : vector<128xf32>
      %11 = vector.multi_reduction <add>, %10, %cst_5 [0] : vector<8x128xf32> to vector<128xf32>
      %12 = vector.shape_cast %11 : vector<128xf32> to vector<1x128xf32>
      %cst_6 = arith.constant 8.000000e+00 : f32
      %13 = vector.broadcast %cst_6 : f32 to vector<1x128xf32>
      %14 = arith.divf %12, %13 : vector<1x128xf32>
      %15 = vector.broadcast %14 : vector<1x128xf32> to vector<8x128xf32>
      %16 = arith.subf %10, %15 : vector<8x128xf32>
      %17 = arith.mulf %16, %16 : vector<8x128xf32>
      %cst_7 = arith.constant dense<0.000000e+00> : vector<128xf32>
      %18 = vector.multi_reduction <add>, %17, %cst_7 [0] : vector<8x128xf32> to vector<128xf32>
      %19 = vector.shape_cast %18 : vector<128xf32> to vector<1x128xf32>
      %cst_8 = arith.constant 8.000000e+00 : f32
      %20 = vector.broadcast %cst_8 : f32 to vector<1x128xf32>
      %21 = arith.divf %19, %20 : vector<1x128xf32>
      %c0_9 = arith.constant 0 : index
      %22 = arith.index_cast %7 : i32 to index
      %23 = vector.load %arg3[%c0_9, %22] : memref<1x128xf32, #tpu.memory_space<vmem>>, vector<1x128xf32>
      %cst_10 = arith.constant 9.99999974E-6 : f32
      %24 = vector.broadcast %cst_10 : f32 to vector<1x128xf32>
      %25 = arith.addf %21, %24 : vector<1x128xf32>
      %26 = math.rsqrt %25 : vector<1x128xf32>
      %27 = arith.mulf %23, %26 : vector<1x128xf32>
      %c0_11 = arith.constant 0 : index
      %28 = arith.index_cast %7 : i32 to index
      %29 = vector.load %arg4[%c0_11, %28] : memref<1x128xf32, #tpu.memory_space<vmem>>, vector<1x128xf32>
      %30 = arith.mulf %14, %27 : vector<1x128xf32>
      %31 = arith.subf %29, %30 : vector<1x128xf32>
      %32 = vector.broadcast %27 : vector<1x128xf32> to vector<8x128xf32>
      %33 = arith.mulf %10, %32 : vector<8x128xf32>
      %34 = vector.broadcast %31 : vector<1x128xf32> to vector<8x128xf32>
      %35 = arith.addf %33, %34 : vector<8x128xf32>
      %cst_12 = arith.constant 0.000000e+00 : f32
      %36 = vector.broadcast %cst_12 : f32 to vector<8x128xf32>
      %37 = arith.maximumf %35, %36 : vector<8x128xf32>
      %38 = arith.truncf %37 : vector<8x128xf32> to vector<8x128xbf16>
      %c0_13 = arith.constant 0 : index
      %39 = arith.index_cast %7 : i32 to index
      %40 = vector.load %arg11[%c0_13, %39] : memref<8x128xbf16, #tpu.memory_space<vmem>>, vector<8x128xbf16>
      tpu.vector_store %arg11[%c0_13, %39], %38 {strides = array<i32>} : memref<8x128xbf16, #tpu.memory_space<vmem>>, vector<8x128xbf16>,
    } else {
    }
    %c1_i32_0 = arith.constant 1 : i32
    %3 = arith.cmpi sge, %arg0, %c1_i32_0 : i32
    %4 = arith.extui %3 : i1 to i32
    %c0_i32_1 = arith.constant 0 : i32
    %5 = arith.cmpi ne, %4, %c0_i32_1 : i32
    scf.if %5 {
      %c1_i32_2 = arith.constant 1 : i32
      %6 = arith.subi %arg0, %c1_i32_2 : i32
      %c128_i32 = arith.constant 128 : i32
      %7 = arith.muli %6, %c128_i32 : i32
      %8 = tpu.assume_multiple %7, 128 : i32
      %c0 = arith.constant 0 : index
      %c0_3 = arith.constant 0 : index
      %9 = vector.load %arg11[%c0, %c0_3] : memref<8x128xbf16, #tpu.memory_space<vmem>>, vector<8x128xbf16>
      %c0_4 = arith.constant 0 : index
      %c0_5 = arith.constant 0 : index
      %10 = vector.load %arg5[%c0_4, %c0_5] : memref<128x128xbf16, #tpu.memory_space<vmem>>, vector<128x128xbf16>
      %cst = arith.constant dense<0.000000e+00> : vector<8x128xf32>
      %11 = tpu.matmul %9, %10, %cst {dimension_numbers = #tpu.dot_dimension_numbers<[1], [0], [0], [1], [0, 0, 1, 1], [], []>} : vector<8x128xbf16>, vector<128x128xbf16>, vector<8x128xf32> -> vector<8x128xf32>
      %cst_6 = arith.constant dense<0.000000e+00> : vector<128xf32>
      %12 = vector.multi_reduction <add>, %11, %cst_6 [0] : vector<8x128xf32> to vector<128xf32>
      %13 = vector.shape_cast %12 : vector<128xf32> to vector<1x128xf32>
      %cst_7 = arith.constant 8.000000e+00 : f32
      %14 = vector.broadcast %cst_7 : f32 to vector<1x128xf32>
      %15 = arith.divf %13, %14 : vector<1x128xf32>
      %16 = vector.broadcast %15 : vector<1x128xf32> to vector<8x128xf32>
      %17 = arith.subf %11, %16 : vector<8x128xf32>
      %18 = arith.mulf %17, %17 : vector<8x128xf32>
      %cst_8 = arith.constant dense<0.000000e+00> : vector<128xf32>
      %19 = vector.multi_reduction <add>, %18, %cst_8 [0] : vector<8x128xf32> to vector<128xf32>
      %20 = vector.shape_cast %19 : vector<128xf32> to vector<1x128xf32>
      %cst_9 = arith.constant 8.000000e+00 : f32
      %21 = vector.broadcast %cst_9 : f32 to vector<1x128xf32>
      %22 = arith.divf %20, %21 : vector<1x128xf32>
      %c0_10 = arith.constant 0 : index
      %23 = arith.index_cast %8 : i32 to index
      %24 = vector.load %arg6[%c0_10, %23] : memref<1x128xf32, #tpu.memory_space<vmem>>, vector<1x128xf32>
      %cst_11 = arith.constant 9.99999974E-6 : f32
      %25 = vector.broadcast %cst_11 : f32 to vector<1x128xf32>
      %26 = arith.addf %22, %25 : vector<1x128xf32>
      %27 = math.rsqrt %26 : vector<1x128xf32>
      %28 = arith.mulf %24, %27 : vector<1x128xf32>
      %c0_12 = arith.constant 0 : index
      %29 = arith.index_cast %8 : i32 to index
      %30 = vector.load %arg7[%c0_12, %29] : memref<1x128xf32, #tpu.memory_space<vmem>>, vector<1x128xf32>
      %31 = arith.mulf %15, %28 : vector<1x128xf32>
      %32 = arith.subf %30, %31 : vector<1x128xf32>
      %33 = vector.broadcast %28 : vector<1x128xf32> to vector<8x128xf32>
      %34 = arith.mulf %11, %33 : vector<8x128xf32>
      %35 = vector.broadcast %32 : vector<1x128xf32> to vector<8x128xf32>
      %36 = arith.addf %34, %35 : vector<8x128xf32>
      %cst_13 = arith.constant 0.000000e+00 : f32
      %37 = vector.broadcast %cst_13 : f32 to vector<8x128xf32>
      %38 = arith.maximumf %36, %37 : vector<8x128xf32>
      %39 = arith.truncf %38 : vector<8x128xf32> to vector<8x128xbf16>
      %c0_14 = arith.constant 0 : index
      %c0_15 = arith.constant 0 : index
      %40 = vector.load %arg8[%c0_14, %c0_15] : memref<128x128xbf16, #tpu.memory_space<vmem>>, vector<128x128xbf16>
      %cst_16 = arith.constant dense<0.000000e+00> : vector<8x128xf32>
      %41 = tpu.matmul %39, %40, %cst_16 {dimension_numbers = #tpu.dot_dimension_numbers<[1], [0], [0], [1], [0, 0, 1, 1], [], []>} : vector<8x128xbf16>, vector<128x128xbf16>, vector<8x128xf32> -> vector<8x128xf32>
      %c0_i32_17 = arith.constant 0 : i32
      %42 = arith.cmpi eq, %6, %c0_i32_17 : i32
      %43 = arith.extui %42 : i1 to i32
      %c0_i32_18 = arith.constant 0 : i32
      %44 = arith.cmpi ne, %43, %c0_i32_18 : i32
      scf.if %44 {
        %c0_23 = arith.constant 0 : index
        %c0_24 = arith.constant 0 : index
        %51 = vector.load %arg9[%c0_23, %c0_24] : memref<1x128xf32, #tpu.memory_space<vmem>>, vector<1x128xf32>
        %52 = vector.broadcast %51 : vector<1x128xf32> to vector<8x128xf32>
        %53 = arith.addf %41, %52 : vector<8x128xf32>
        %c0_25 = arith.constant 0 : index
        %c0_26 = arith.constant 0 : index
        %54 = vector.load %arg12[%c0_25, %c0_26] : memref<8x128xf32, #tpu.memory_space<vmem>>, vector<8x128xf32>
        tpu.vector_store %arg12[%c0_25, %c0_26], %53 {strides = array<i32>} : memref<8x128xf32, #tpu.memory_space<vmem>>, vector<8x128xf32>,
      } else {
      }
      %c0_i32_19 = arith.constant 0 : i32
      %45 = arith.cmpi sgt, %6, %c0_i32_19 : i32
      %46 = arith.extui %45 : i1 to i32
      %c0_i32_20 = arith.constant 0 : i32
      %47 = arith.cmpi ne, %46, %c0_i32_20 : i32
      scf.if %47 {
        %c0_23 = arith.constant 0 : index
        %c0_24 = arith.constant 0 : index
        %51 = vector.load %arg12[%c0_23, %c0_24] : memref<8x128xf32, #tpu.memory_space<vmem>>, vector<8x128xf32>
        %52 = arith.addf %51, %41 : vector<8x128xf32>
        %c0_25 = arith.constant 0 : index
        %c0_26 = arith.constant 0 : index
        %53 = vector.load %arg12[%c0_25, %c0_26] : memref<8x128xf32, #tpu.memory_space<vmem>>, vector<8x128xf32>
        tpu.vector_store %arg12[%c0_25, %c0_26], %52 {strides = array<i32>} : memref<8x128xf32, #tpu.memory_space<vmem>>, vector<8x128xf32>,
      } else {
      }
      %c1_i32_21 = arith.constant 1 : i32
      %48 = arith.cmpi eq, %arg0, %c1_i32_21 : i32
      %49 = arith.extui %48 : i1 to i32
      %c0_i32_22 = arith.constant 0 : i32
      %50 = arith.cmpi ne, %49, %c0_i32_22 : i32
      scf.if %50 {
        %c0_23 = arith.constant 0 : index
        %c0_24 = arith.constant 0 : index
        %51 = vector.load %arg12[%c0_23, %c0_24] : memref<8x128xf32, #tpu.memory_space<vmem>>, vector<8x128xf32>
        %c0_25 = arith.constant 0 : index
        %c0_26 = arith.constant 0 : index
        %52 = vector.load %arg10[%c0_25, %c0_26] : memref<8x128xf32, #tpu.memory_space<vmem>>, vector<8x128xf32>
        tpu.vector_store %arg10[%c0_25, %c0_26], %51 {strides = array<i32>} : memref<8x128xf32, #tpu.memory_space<vmem>>, vector<8x128xf32>,
      } else {
      }
    } else {
    }
    return
  }
  func.func @transform_0(%arg0: i32) -> (i32, i32) {
    %c0_i32 = arith.constant 0 : i32
    %c0_i32_0 = arith.constant 0 : i32
    %c0_i32_1 = arith.constant 0 : i32
    return %c0_i32, %c0_i32_0 : i32, i32
  }
  func.func @transform_1(%arg0: i32) -> (i32, i32) {
    %c0_i32 = arith.constant 0 : i32
    %0 = arith.minsi %arg0, %c0_i32 : i32
    %c0_i32_0 = arith.constant 0 : i32
    %c0_i32_1 = arith.constant 0 : i32
    return %c0_i32_0, %0 : i32, i32
  }
  func.func @transform_2(%arg0: i32) -> (i32, i32) {
    %c0_i32 = arith.constant 0 : i32
    %c0_i32_0 = arith.constant 0 : i32
    %c0_i32_1 = arith.constant 0 : i32
    return %c0_i32, %c0_i32_0 : i32, i32
  }
  func.func @transform_3(%arg0: i32) -> (i32, i32) {
    %c0_i32 = arith.constant 0 : i32
    %c0_i32_0 = arith.constant 0 : i32
    %c0_i32_1 = arith.constant 0 : i32
    return %c0_i32, %c0_i32_0 : i32, i32
  }
  func.func @transform_4(%arg0: i32) -> (i32, i32) {
    %c1_i32 = arith.constant 1 : i32
    %0 = arith.subi %arg0, %c1_i32 : i32
    %c0_i32 = arith.constant 0 : i32
    %1 = arith.maxsi %0, %c0_i32 : i32
    %c0_i32_0 = arith.constant 0 : i32
    %c0_i32_1 = arith.constant 0 : i32
    return %c0_i32_0, %1 : i32, i32
  }
  func.func @transform_5(%arg0: i32) -> (i32, i32) {
    %c0_i32 = arith.constant 0 : i32
    %c0_i32_0 = arith.constant 0 : i32
    %c0_i32_1 = arith.constant 0 : i32
    return %c0_i32, %c0_i32_0 : i32, i32
  }
  func.func @transform_6(%arg0: i32) -> (i32, i32) {
    %c0_i32 = arith.constant 0 : i32
    %c0_i32_0 = arith.constant 0 : i32
    %c0_i32_1 = arith.constant 0 : i32
    return %c0_i32, %c0_i32_0 : i32, i32
  }
  func.func @transform_7(%arg0: i32) -> (i32, i32) {
    %c1_i32 = arith.constant 1 : i32
    %0 = arith.subi %arg0, %c1_i32 : i32
    %c0_i32 = arith.constant 0 : i32
    %1 = arith.maxsi %0, %c0_i32 : i32
    %c0_i32_0 = arith.constant 0 : i32
    %c0_i32_1 = arith.constant 0 : i32
    return %1, %c0_i32_0 : i32, i32
  }
  func.func @transform_8(%arg0: i32) -> (i32, i32) {
    %c0_i32 = arith.constant 0 : i32
    %c0_i32_0 = arith.constant 0 : i32
    %c0_i32_1 = arith.constant 0 : i32
    return %c0_i32, %c0_i32_0 : i32, i32
  }
  func.func @transform_9(%arg0: i32) -> (i32, i32) {
    %c0_i32 = arith.constant 0 : i32
    %c0_i32_0 = arith.constant 0 : i32
    %c0_i32_1 = arith.constant 0 : i32
    return %c0_i32, %c0_i32_0 : i32, i32
  }
}

module attributes {stable_mosaic.version = 11 : i64} {
  func.func @projection_head_kernel(%arg0: i32, %arg1: memref<8x32xbf16, #tpu.memory_space<vmem>>, %arg2: memref<32x128xbf16, #tpu.memory_space<vmem>>, %arg3: memref<1x128xf32, #tpu.memory_space<vmem>>, %arg4: memref<1x128xf32, #tpu.memory_space<vmem>>, %arg5: memref<128x128xbf16, #tpu.memory_space<vmem>>, %arg6: memref<1x128xf32, #tpu.memory_space<vmem>>, %arg7: memref<1x128xf32, #tpu.memory_space<vmem>>, %arg8: memref<128x128xbf16, #tpu.memory_space<vmem>>, %arg9: memref<1x128xf32, #tpu.memory_space<vmem>>, %arg10: memref<8x128xf32, #tpu.memory_space<vmem>>, %arg11: memref<8x128xbf16, #tpu.memory_space<vmem>>, %arg12: memref<8x128xf32, #tpu.memory_space<vmem>>) attributes {dimension_semantics = [#tpu.dimension_semantics<arbitrary>], iteration_bounds = array<i64: 2>, scalar_prefetch = 0 : i64, scratch_operands = 2 : i64, tpu.core_type = #tpu.core_type<tc>, window_params = [{pipeline_mode = #tpu.pipeline_mode<synchronous>, transform_indices = @transform_0, window_bounds = array<i64: 8, 32>}, {transform_indices = @transform_1, window_bounds = array<i64: 32, 128>}, {pipeline_mode = #tpu.pipeline_mode<synchronous>, transform_indices = @transform_2, window_bounds = array<i64: 1, 128>}, {pipeline_mode = #tpu.pipeline_mode<synchronous>, transform_indices = @transform_3, window_bounds = array<i64: 1, 128>}, {transform_indices = @transform_4, window_bounds = array<i64: 128, 128>}, {pipeline_mode = #tpu.pipeline_mode<synchronous>, transform_indices = @transform_5, window_bounds = array<i64: 1, 128>}, {pipeline_mode = #tpu.pipeline_mode<synchronous>, transform_indices = @transform_6, window_bounds = array<i64: 1, 128>}, {transform_indices = @transform_7, window_bounds = array<i64: 128, 128>}, {pipeline_mode = #tpu.pipeline_mode<synchronous>, transform_indices = @transform_8, window_bounds = array<i64: 1, 128>}, {pipeline_mode = #tpu.pipeline_mode<synchronous>, transform_indices = @transform_9, window_bounds = array<i64: 8, 128>}]} {
    %c1_i32 = arith.constant 1 : i32
    %0 = arith.cmpi slt, %arg0, %c1_i32 : i32
    %1 = arith.extui %0 : i1 to i32
    %c0_i32 = arith.constant 0 : i32
    %2 = arith.cmpi ne, %1, %c0_i32 : i32
    scf.if %2 {
      %c128_i32 = arith.constant 128 : i32
      %6 = arith.muli %arg0, %c128_i32 : i32
      %7 = tpu.assume_multiple %6, 128 : i32
      %c0 = arith.constant 0 : index
      %c0_2 = arith.constant 0 : index
      %8 = vector.load %arg1[%c0, %c0_2] : memref<8x32xbf16, #tpu.memory_space<vmem>>, vector<8x32xbf16>
      %c0_3 = arith.constant 0 : index
      %c0_4 = arith.constant 0 : index
      %9 = vector.load %arg2[%c0_3, %c0_4] : memref<32x128xbf16, #tpu.memory_space<vmem>>, vector<32x128xbf16>
      %cst = arith.constant dense<0.000000e+00> : vector<8x128xf32>
      %10 = tpu.matmul %8, %9, %cst {dimension_numbers = #tpu.dot_dimension_numbers<[1], [0], [0], [1], [0, 0, 1, 1], [], []>} : vector<8x32xbf16>, vector<32x128xbf16>, vector<8x128xf32> -> vector<8x128xf32>
      %cst_5 = arith.constant dense<0.000000e+00> : vector<128xf32>
      %11 = vector.multi_reduction <add>, %10, %cst_5 [0] : vector<8x128xf32> to vector<128xf32>
      %12 = vector.shape_cast %11 : vector<128xf32> to vector<1x128xf32>
      %cst_6 = arith.constant 8.000000e+00 : f32
      %13 = vector.broadcast %cst_6 : f32 to vector<1x128xf32>
      %14 = arith.divf %12, %13 : vector<1x128xf32>
      %15 = vector.broadcast %14 : vector<1x128xf32> to vector<8x128xf32>
      %16 = arith.subf %10, %15 : vector<8x128xf32>
      %17 = arith.mulf %16, %16 : vector<8x128xf32>
      %cst_7 = arith.constant dense<0.000000e+00> : vector<128xf32>
      %18 = vector.multi_reduction <add>, %17, %cst_7 [0] : vector<8x128xf32> to vector<128xf32>
      %19 = vector.shape_cast %18 : vector<128xf32> to vector<1x128xf32>
      %cst_8 = arith.constant 8.000000e+00 : f32
      %20 = vector.broadcast %cst_8 : f32 to vector<1x128xf32>
      %21 = arith.divf %19, %20 : vector<1x128xf32>
      %c0_9 = arith.constant 0 : index
      %22 = arith.index_cast %7 : i32 to index
      %23 = vector.load %arg3[%c0_9, %22] : memref<1x128xf32, #tpu.memory_space<vmem>>, vector<1x128xf32>
      %cst_10 = arith.constant 9.99999974E-6 : f32
      %24 = vector.broadcast %cst_10 : f32 to vector<1x128xf32>
      %25 = arith.addf %21, %24 : vector<1x128xf32>
      %26 = math.rsqrt %25 : vector<1x128xf32>
      %27 = arith.mulf %23, %26 : vector<1x128xf32>
      %c0_11 = arith.constant 0 : index
      %28 = arith.index_cast %7 : i32 to index
      %29 = vector.load %arg4[%c0_11, %28] : memref<1x128xf32, #tpu.memory_space<vmem>>, vector<1x128xf32>
      %30 = arith.mulf %14, %27 : vector<1x128xf32>
      %31 = arith.subf %29, %30 : vector<1x128xf32>
      %32 = vector.broadcast %27 : vector<1x128xf32> to vector<8x128xf32>
      %33 = arith.mulf %10, %32 : vector<8x128xf32>
      %34 = vector.broadcast %31 : vector<1x128xf32> to vector<8x128xf32>
      %35 = arith.addf %33, %34 : vector<8x128xf32>
      %cst_12 = arith.constant 0.000000e+00 : f32
      %36 = vector.broadcast %cst_12 : f32 to vector<8x128xf32>
      %37 = arith.maximumf %35, %36 : vector<8x128xf32>
      %38 = arith.truncf %37 : vector<8x128xf32> to vector<8x128xbf16>
      %c0_13 = arith.constant 0 : index
      %39 = arith.index_cast %7 : i32 to index
      %40 = vector.load %arg11[%c0_13, %39] : memref<8x128xbf16, #tpu.memory_space<vmem>>, vector<8x128xbf16>
      tpu.vector_store %arg11[%c0_13, %39], %38 {strides = array<i32>} : memref<8x128xbf16, #tpu.memory_space<vmem>>, vector<8x128xbf16>,
    } else {
    }
    %c1_i32_0 = arith.constant 1 : i32
    %3 = arith.cmpi sge, %arg0, %c1_i32_0 : i32
    %4 = arith.extui %3 : i1 to i32
    %c0_i32_1 = arith.constant 0 : i32
    %5 = arith.cmpi ne, %4, %c0_i32_1 : i32
    scf.if %5 {
      %c1_i32_2 = arith.constant 1 : i32
      %6 = arith.subi %arg0, %c1_i32_2 : i32
      %c128_i32 = arith.constant 128 : i32
      %7 = arith.muli %6, %c128_i32 : i32
      %8 = tpu.assume_multiple %7, 128 : i32
      %c0 = arith.constant 0 : index
      %c0_3 = arith.constant 0 : index
      %9 = vector.load %arg11[%c0, %c0_3] : memref<8x128xbf16, #tpu.memory_space<vmem>>, vector<8x128xbf16>
      %c0_4 = arith.constant 0 : index
      %c0_5 = arith.constant 0 : index
      %10 = vector.load %arg5[%c0_4, %c0_5] : memref<128x128xbf16, #tpu.memory_space<vmem>>, vector<128x128xbf16>
      %cst = arith.constant dense<0.000000e+00> : vector<8x128xf32>
      %11 = tpu.matmul %9, %10, %cst {dimension_numbers = #tpu.dot_dimension_numbers<[1], [0], [0], [1], [0, 0, 1, 1], [], []>} : vector<8x128xbf16>, vector<128x128xbf16>, vector<8x128xf32> -> vector<8x128xf32>
      %cst_6 = arith.constant dense<0.000000e+00> : vector<128xf32>
      %12 = vector.multi_reduction <add>, %11, %cst_6 [0] : vector<8x128xf32> to vector<128xf32>
      %13 = vector.shape_cast %12 : vector<128xf32> to vector<1x128xf32>
      %cst_7 = arith.constant 8.000000e+00 : f32
      %14 = vector.broadcast %cst_7 : f32 to vector<1x128xf32>
      %15 = arith.divf %13, %14 : vector<1x128xf32>
      %16 = vector.broadcast %15 : vector<1x128xf32> to vector<8x128xf32>
      %17 = arith.subf %11, %16 : vector<8x128xf32>
      %18 = arith.mulf %17, %17 : vector<8x128xf32>
      %cst_8 = arith.constant dense<0.000000e+00> : vector<128xf32>
      %19 = vector.multi_reduction <add>, %18, %cst_8 [0] : vector<8x128xf32> to vector<128xf32>
      %20 = vector.shape_cast %19 : vector<128xf32> to vector<1x128xf32>
      %cst_9 = arith.constant 8.000000e+00 : f32
      %21 = vector.broadcast %cst_9 : f32 to vector<1x128xf32>
      %22 = arith.divf %20, %21 : vector<1x128xf32>
      %c0_10 = arith.constant 0 : index
      %23 = arith.index_cast %8 : i32 to index
      %24 = vector.load %arg6[%c0_10, %23] : memref<1x128xf32, #tpu.memory_space<vmem>>, vector<1x128xf32>
      %cst_11 = arith.constant 9.99999974E-6 : f32
      %25 = vector.broadcast %cst_11 : f32 to vector<1x128xf32>
      %26 = arith.addf %22, %25 : vector<1x128xf32>
      %27 = math.rsqrt %26 : vector<1x128xf32>
      %28 = arith.mulf %24, %27 : vector<1x128xf32>
      %c0_12 = arith.constant 0 : index
      %29 = arith.index_cast %8 : i32 to index
      %30 = vector.load %arg7[%c0_12, %29] : memref<1x128xf32, #tpu.memory_space<vmem>>, vector<1x128xf32>
      %31 = arith.mulf %15, %28 : vector<1x128xf32>
      %32 = arith.subf %30, %31 : vector<1x128xf32>
      %33 = vector.broadcast %28 : vector<1x128xf32> to vector<8x128xf32>
      %34 = arith.mulf %11, %33 : vector<8x128xf32>
      %35 = vector.broadcast %32 : vector<1x128xf32> to vector<8x128xf32>
      %36 = arith.addf %34, %35 : vector<8x128xf32>
      %cst_13 = arith.constant 0.000000e+00 : f32
      %37 = vector.broadcast %cst_13 : f32 to vector<8x128xf32>
      %38 = arith.maximumf %36, %37 : vector<8x128xf32>
      %39 = arith.truncf %38 : vector<8x128xf32> to vector<8x128xbf16>
      %c0_14 = arith.constant 0 : index
      %c0_15 = arith.constant 0 : index
      %40 = vector.load %arg8[%c0_14, %c0_15] : memref<128x128xbf16, #tpu.memory_space<vmem>>, vector<128x128xbf16>
      %cst_16 = arith.constant dense<0.000000e+00> : vector<8x128xf32>
      %41 = tpu.matmul %39, %40, %cst_16 {dimension_numbers = #tpu.dot_dimension_numbers<[1], [0], [0], [1], [0, 0, 1, 1], [], []>} : vector<8x128xbf16>, vector<128x128xbf16>, vector<8x128xf32> -> vector<8x128xf32>
      %c0_i32_17 = arith.constant 0 : i32
      %42 = arith.cmpi eq, %6, %c0_i32_17 : i32
      %43 = arith.extui %42 : i1 to i32
      %c0_i32_18 = arith.constant 0 : i32
      %44 = arith.cmpi ne, %43, %c0_i32_18 : i32
      scf.if %44 {
        %c0_23 = arith.constant 0 : index
        %c0_24 = arith.constant 0 : index
        %51 = vector.load %arg9[%c0_23, %c0_24] : memref<1x128xf32, #tpu.memory_space<vmem>>, vector<1x128xf32>
        %52 = vector.broadcast %51 : vector<1x128xf32> to vector<8x128xf32>
        %53 = arith.addf %41, %52 : vector<8x128xf32>
        %c0_25 = arith.constant 0 : index
        %c0_26 = arith.constant 0 : index
        %54 = vector.load %arg12[%c0_25, %c0_26] : memref<8x128xf32, #tpu.memory_space<vmem>>, vector<8x128xf32>
        tpu.vector_store %arg12[%c0_25, %c0_26], %53 {strides = array<i32>} : memref<8x128xf32, #tpu.memory_space<vmem>>, vector<8x128xf32>,
      } else {
      }
      %c0_i32_19 = arith.constant 0 : i32
      %45 = arith.cmpi sgt, %6, %c0_i32_19 : i32
      %46 = arith.extui %45 : i1 to i32
      %c0_i32_20 = arith.constant 0 : i32
      %47 = arith.cmpi ne, %46, %c0_i32_20 : i32
      scf.if %47 {
        %c0_23 = arith.constant 0 : index
        %c0_24 = arith.constant 0 : index
        %51 = vector.load %arg12[%c0_23, %c0_24] : memref<8x128xf32, #tpu.memory_space<vmem>>, vector<8x128xf32>
        %52 = arith.addf %51, %41 : vector<8x128xf32>
        %c0_25 = arith.constant 0 : index
        %c0_26 = arith.constant 0 : index
        %53 = vector.load %arg12[%c0_25, %c0_26] : memref<8x128xf32, #tpu.memory_space<vmem>>, vector<8x128xf32>
        tpu.vector_store %arg12[%c0_25, %c0_26], %52 {strides = array<i32>} : memref<8x128xf32, #tpu.memory_space<vmem>>, vector<8x128xf32>,
      } else {
      }
      %c1_i32_21 = arith.constant 1 : i32
      %48 = arith.cmpi eq, %arg0, %c1_i32_21 : i32
      %49 = arith.extui %48 : i1 to i32
      %c0_i32_22 = arith.constant 0 : i32
      %50 = arith.cmpi ne, %49, %c0_i32_22 : i32
      scf.if %50 {
        %c0_23 = arith.constant 0 : index
        %c0_24 = arith.constant 0 : index
        %51 = vector.load %arg12[%c0_23, %c0_24] : memref<8x128xf32, #tpu.memory_space<vmem>>, vector<8x128xf32>
        %c0_25 = arith.constant 0 : index
        %c0_26 = arith.constant 0 : index
        %52 = vector.load %arg10[%c0_25, %c0_26] : memref<8x128xf32, #tpu.memory_space<vmem>>, vector<8x128xf32>
        tpu.vector_store %arg10[%c0_25, %c0_26], %51 {strides = array<i32>} : memref<8x128xf32, #tpu.memory_space<vmem>>, vector<8x128xf32>,
      } else {
      }
    } else {
    }
    return
  }
  func.func @transform_0(%arg0: i32) -> (i32, i32) {
    %c0_i32 = arith.constant 0 : i32
    %c0_i32_0 = arith.constant 0 : i32
    %c0_i32_1 = arith.constant 0 : i32
    return %c0_i32, %c0_i32_0 : i32, i32
  }
  func.func @transform_1(%arg0: i32) -> (i32, i32) {
    %c0_i32 = arith.constant 0 : i32
    %0 = arith.minsi %arg0, %c0_i32 : i32
    %c0_i32_0 = arith.constant 0 : i32
    %c0_i32_1 = arith.constant 0 : i32
    return %c0_i32_0, %0 : i32, i32
  }
  func.func @transform_2(%arg0: i32) -> (i32, i32) {
    %c0_i32 = arith.constant 0 : i32
    %c0_i32_0 = arith.constant 0 : i32
    %c0_i32_1 = arith.constant 0 : i32
    return %c0_i32, %c0_i32_0 : i32, i32
  }
  func.func @transform_3(%arg0: i32) -> (i32, i32) {
    %c0_i32 = arith.constant 0 : i32
    %c0_i32_0 = arith.constant 0 : i32
    %c0_i32_1 = arith.constant 0 : i32
    return %c0_i32, %c0_i32_0 : i32, i32
  }
  func.func @transform_4(%arg0: i32) -> (i32, i32) {
    %c1_i32 = arith.constant 1 : i32
    %0 = arith.subi %arg0, %c1_i32 : i32
    %c0_i32 = arith.constant 0 : i32
    %1 = arith.maxsi %0, %c0_i32 : i32
    %c0_i32_0 = arith.constant 0 : i32
    %c0_i32_1 = arith.constant 0 : i32
    return %c0_i32_0, %1 : i32, i32
  }
  func.func @transform_5(%arg0: i32) -> (i32, i32) {
    %c0_i32 = arith.constant 0 : i32
    %c0_i32_0 = arith.constant 0 : i32
    %c0_i32_1 = arith.constant 0 : i32
    return %c0_i32, %c0_i32_0 : i32, i32
  }
  func.func @transform_6(%arg0: i32) -> (i32, i32) {
    %c0_i32 = arith.constant 0 : i32
    %c0_i32_0 = arith.constant 0 : i32
    %c0_i32_1 = arith.constant 0 : i32
    return %c0_i32, %c0_i32_0 : i32, i32
  }
  func.func @transform_7(%arg0: i32) -> (i32, i32) {
    %c1_i32 = arith.constant 1 : i32
    %0 = arith.subi %arg0, %c1_i32 : i32
    %c0_i32 = arith.constant 0 : i32
    %1 = arith.maxsi %0, %c0_i32 : i32
    %c0_i32_0 = arith.constant 0 : i32
    %c0_i32_1 = arith.constant 0 : i32
    return %1, %c0_i32_0 : i32, i32
  }
  func.func @transform_8(%arg0: i32) -> (i32, i32) {
    %c0_i32 = arith.constant 0 : i32
    %c0_i32_0 = arith.constant 0 : i32
    %c0_i32_1 = arith.constant 0 : i32
    return %c0_i32, %c0_i32_0 : i32, i32
  }
  func.func @transform_9(%arg0: i32) -> (i32, i32) {
    %c0_i32 = arith.constant 0 : i32
    %c0_i32_0 = arith.constant 0 : i32
    %c0_i32_1 = arith.constant 0 : i32
    return %c0_i32, %c0_i32_0 : i32, i32
  }
}

</mosaic_0001>

<llo_original>
// kernel: tpu_custom_call.1
$region0: #{tpu_custom_call.1}
  #allocation0 [shape = 'u32[]', space=smem, size = 0x4, offset = 0x4, fixed_abs, tag = 'smem constant byte address 0x4 - core index']
  #allocation1 [shape = 'u32[72,128]{1,0:T(1,128)}', space=vmem, size = 0x9000, scoped, tag = 'internal scratch']
  #allocation2 [shape = 'bf16[8,128]{1,0:T(8,128)(2,1)}', space=vmem, size = 0x800, scoped, tag = 'scratch operand']
  #allocation3 [shape = 'f32[8,128]{1,0:T(8,128)}', space=vmem, size = 0x1000, scoped, tag = 'scratch operand']
  %s0 = inlined_call_operand.hbm [shape: bf16[8,32], index: 0, kind: input, shape index: {}]
  %s1 = inlined_call_operand.hbm [shape: bf16[32,128], index: 1, kind: input, shape index: {}]
  %s2 = inlined_call_operand.vmem [shape: f32[1,128], index: 2, kind: input, shape index: {}]
  %s3 = inlined_call_operand.vmem [shape: f32[1,128], index: 3, kind: input, shape index: {}]
  %s4 = inlined_call_operand.hbm [shape: bf16[128,128], index: 4, kind: input, shape index: {}]
  %s5 = inlined_call_operand.vmem [shape: f32[1,128], index: 5, kind: input, shape index: {}]
  %s6 = inlined_call_operand.vmem [shape: f32[1,128], index: 6, kind: input, shape index: {}]
  %s7 = inlined_call_operand.hbm [shape: bf16[128,128], index: 7, kind: input, shape index: {}]
  %s8 = inlined_call_operand.vmem [shape: f32[1,128], index: 8, kind: input, shape index: {}]
  %s9 = inlined_call_operand.hbm [shape: f32[8,128], index: 9, kind: output, shape index: {}]
  %s10 = sld [smem:[#allocation0]]
  $region105: #{tpu_custom_call.1} parent=0
    _
  %s12 = ssub.s32 1, %s10
  %s13 = scalar_select 0, %s12, %s10
  $region1: #{tpu_custom_call.1} parent=0
    #allocation4 [shape = 'u8[2048]{0}', space=vmem, size = 0x800, scoped, tag = 'input window, operand 0, single buffered']
    #allocation5 [shape = 's32[2]{0}', space=sflag, size = 0x8, scoped, tag = 'scoped memory for tpu_custom_call.1']
    #allocation6 [shape = 's32[2]{0}', space=sflag, size = 0x8, scoped, tag = 'scoped memory for tpu_custom_call.1']
    #allocation7 [shape = 'u8[16384]{0}', space=vmem, size = 0x4000, scoped, tag = 'input window, operand 1']
    #allocation8 [shape = 's32[2]{0}', space=sflag, size = 0x8, scoped, tag = 'scoped memory for tpu_custom_call.1']
    #allocation9 [shape = 'u8[65536]{0}', space=vmem, size = 0x10000, scoped, tag = 'input window, operand 4']
    #allocation10 [shape = 'u8[65536]{0}', space=vmem, size = 0x10000, scoped, tag = 'input window, operand 7']
    #allocation11 [shape = 's32[2]{0}', space=sflag, size = 0x8, scoped, tag = 'scoped memory for tpu_custom_call.1']
    #allocation12 [shape = 'u8[4096]{0}', space=vmem, size = 0x1000, scoped, tag = 'output window, operand 0, single buffered']
    %14 = vsyncpa [#allocation5], 0
    %15 = vsyncpa [#allocation8], 0
    %s16 = scalar_lea.sflag [#allocation8], 1
    %17 = vsyncpa %s16, 0
    %18 = vsyncpa [#allocation11], 0
    %s19 = scalar_lea.sflag [#allocation11], 1
    %20 = vsyncpa %s19, 0
    %21 = vsyncpa [#allocation6], 0
    loop: start=0, step=1, limit=4
    $region2: #{tpu_custom_call.1} parent=1 // loop_pre_header
      _
    $region3: #{tpu_custom_call.1} parent=1 // loop_header
      %s23 = sphi 0, %s27
      %p24 = scmp.ge.s32.totalorder %s23, 4
      %s31 = sphi 0, %s31
      %s33 = sphi 0, %s31
      %s34 = sphi 0, %s33
      %s48 = sphi 0, %s34
      %s58 = sphi 0, %s60
      %s61 = sphi 0, %s58
      %s62 = sphi 0, %s61
      %s78 = sphi 0, %s62
      %s82 = sphi 0, %s82
      %s84 = sphi 0, %s82
      %s85 = sphi 0, %s84
      %s99 = sphi 0, %s85
      %s103 = sphi 0, %s103
      %s105 = sphi 0, %s103
      %s106 = sphi 0, %s105
      %s120 = sphi 0, %s106
      %s132 = sphi 0, %s134
      %s135 = sphi 0, %s132
      %s136 = sphi 0, %s135
      %s152 = sphi 0, %s136
      %s156 = sphi 0, %s156
      %s158 = sphi 0, %s156
      %s159 = sphi 0, %s158
      %s173 = sphi 0, %s159
      %s177 = sphi 0, %s177
      %s179 = sphi 0, %s177
      %s180 = sphi 0, %s179
      %s194 = sphi 0, %s180
      %s206 = sphi 0, %s208
      %s209 = sphi 0, %s206
      %s210 = sphi 0, %s209
      %s226 = sphi 0, %s210
      %s230 = sphi 0, %s230
      %s232 = sphi 0, %s230
      %s233 = sphi 0, %s232
      %s247 = sphi 0, %s233
      %s251 = sphi 0, %s251
      %s253 = sphi 0, %s251
      %s254 = sphi 0, %s253
      %s268 = sphi 0, %s254
    $region4: #{tpu_custom_call.1} parent=1 // loop_header_branch
      %26 = sbr.rel (%p24) target = $region8
    $region5: #{tpu_custom_call.1} parent=1 // loop_body
      %s28 = ssub.s32 %s23, 1
      %s29 = ssub.s32 %s23, 2
      %s30 = sadd.s32 %s23, 1
      %s32 = sadd.s32 %s31, 1
      %p35 = scmp.eq.s32.totalorder %s23, 1
      %p36 = scmp.ne.s32.totalorder %s31, %s33
      %p37 = scmp.eq.s32.totalorder %s23, 0
      %p38 = por %p36, %p37
      %p39 = scmp.ne.s32.totalorder %s31, %s33
      %p40 = scmp.eq.s32.totalorder %s28, 1
      %p41 = por %p39, %p40
      %p42 = scmp.ne.s32.totalorder %s33, %s34
      %p43 = scmp.eq.s32.totalorder %s28, 0
      %p44 = por %p42, %p43
      %p45 = scmp.ne.s32.totalorder %s33, %s34
      %p46 = scmp.eq.s32.totalorder %s29, 1
      %p47 = por %p45, %p46
      %p49 = scmp.ne.s32.totalorder %s34, %s48
      %p50 = scmp.eq.s32.totalorder %s29, 0
      %p51 = por %p49, %p50
      %p52 = scmp.lt.s32.totalorder %s23, 0
      %s53 = scalar_select %p52, %s23, 0
      %p54 = scmp.lt.s32.totalorder %s30, 0
      %s55 = scalar_select %p54, %s30, 0
      %s56 = ssub.s32 %s53, %s55
      %p57 = scmp.eq.s32.totalorder %s56, 0
      %s59 = sadd.s32 %s58, 1
      %s60 = scalar_select %p57, %s58, %s59
      %p63 = pneg %p57
      %p64 = scmp.eq.s32.totalorder %s23, 1
      %p65 = por %p63, %p64
      %p66 = scmp.ne.s32.totalorder %s58, %s61
      %p67 = scmp.eq.s32.totalorder %s23, 0
      %p68 = por %p66, %p67
      %p69 = scmp.ne.s32.totalorder %s58, %s61
      %p70 = scmp.eq.s32.totalorder %s28, 1
      %p71 = por %p69, %p70
      %p72 = scmp.ne.s32.totalorder %s61, %s62
      %p73 = scmp.eq.s32.totalorder %s28, 0
      %p74 = por %p72, %p73
      %p75 = scmp.ne.s32.totalorder %s61, %s62
      %p76 = scmp.eq.s32.totalorder %s29, 1
      %p77 = por %p75, %p76
      %p79 = scmp.ne.s32.totalorder %s62, %s78
      %p80 = scmp.eq.s32.totalorder %s29, 0
      %p81 = por %p79, %p80
      %s83 = sadd.s32 %s82, 1
      %p86 = scmp.eq.s32.totalorder %s23, 1
      %p87 = scmp.ne.s32.totalorder %s82, %s84
      %p88 = scmp.eq.s32.totalorder %s23, 0
      %p89 = por %p87, %p88
      %p90 = scmp.ne.s32.totalorder %s82, %s84
      %p91 = scmp.eq.s32.totalorder %s28, 1
      %p92 = por %p90, %p91
      %p93 = scmp.ne.s32.totalorder %s84, %s85
      %p94 = scmp.eq.s32.totalorder %s28, 0
      %p95 = por %p93, %p94
      %p96 = scmp.ne.s32.totalorder %s84, %s85
      %p97 = scmp.eq.s32.totalorder %s29, 1
      %p98 = por %p96, %p97
      %p100 = scmp.ne.s32.totalorder %s85, %s99
      %p101 = scmp.eq.s32.totalorder %s29, 0
      %p102 = por %p100, %p101
      %s104 = sadd.s32 %s103, 1
      %p107 = scmp.eq.s32.totalorder %s23, 1
      %p108 = scmp.ne.s32.totalorder %s103, %s105
      %p109 = scmp.eq.s32.totalorder %s23, 0
      %p110 = por %p108, %p109
      %p111 = scmp.ne.s32.totalorder %s103, %s105
      %p112 = scmp.eq.s32.totalorder %s28, 1
      %p113 = por %p111, %p112
      %p114 = scmp.ne.s32.totalorder %s105, %s106
      %p115 = scmp.eq.s32.totalorder %s28, 0
      %p116 = por %p114, %p115
      %p117 = scmp.ne.s32.totalorder %s105, %s106
      %p118 = scmp.eq.s32.totalorder %s29, 1
      %p119 = por %p117, %p118
      %p121 = scmp.ne.s32.totalorder %s106, %s120
      %p122 = scmp.eq.s32.totalorder %s29, 0
      %p123 = por %p121, %p122
      %s124 = ssub.s32 %s23, 1
      %p125 = scmp.gt.s32.totalorder %s124, 0
      %s126 = scalar_select %p125, %s124, 0
      %s127 = ssub.s32 %s30, 1
      %p128 = scmp.gt.s32.totalorder %s127, 0
      %s129 = scalar_select %p128, %s127, 0
      %s130 = ssub.s32 %s126, %s129
      %p131 = scmp.eq.s32.totalorder %s130, 0
      %s133 = sadd.s32 %s132, 1
      %s134 = scalar_select %p131, %s132, %s133
      %p137 = pneg %p131
      %p138 = scmp.eq.s32.totalorder %s23, 1
      %p139 = por %p137, %p138
      %p140 = scmp.ne.s32.totalorder %s132, %s135
      %p141 = scmp.eq.s32.totalorder %s23, 0
      %p142 = por %p140, %p141
      %p143 = scmp.ne.s32.totalorder %s132, %s135
      %p144 = scmp.eq.s32.totalorder %s28, 1
      %p145 = por %p143, %p144
      %p146 = scmp.ne.s32.totalorder %s135, %s136
      %p147 = scmp.eq.s32.totalorder %s28, 0
      %p148 = por %p146, %p147
      %p149 = scmp.ne.s32.totalorder %s135, %s136
      %p150 = scmp.eq.s32.totalorder %s29, 1
      %p151 = por %p149, %p150
      %p153 = scmp.ne.s32.totalorder %s136, %s152
      %p154 = scmp.eq.s32.totalorder %s29, 0
      %p155 = por %p153, %p154
      %s157 = sadd.s32 %s156, 1
      %p160 = scmp.eq.s32.totalorder %s23, 1
      %p161 = scmp.ne.s32.totalorder %s156, %s158
      %p162 = scmp.eq.s32.totalorder %s23, 0
      %p163 = por %p161, %p162
      %p164 = scmp.ne.s32.totalorder %s156, %s158
      %p165 = scmp.eq.s32.totalorder %s28, 1
      %p166 = por %p164, %p165
      %p167 = scmp.ne.s32.totalorder %s158, %s159
      %p168 = scmp.eq.s32.totalorder %s28, 0
      %p169 = por %p167, %p168
      %p170 = scmp.ne.s32.totalorder %s158, %s159
      %p171 = scmp.eq.s32.totalorder %s29, 1
      %p172 = por %p170, %p171
      %p174 = scmp.ne.s32.totalorder %s159, %s173
      %p175 = scmp.eq.s32.totalorder %s29, 0
      %p176 = por %p174, %p175
      %s178 = sadd.s32 %s177, 1
      %p181 = scmp.eq.s32.totalorder %s23, 1
      %p182 = scmp.ne.s32.totalorder %s177, %s179
      %p183 = scmp.eq.s32.totalorder %s23, 0
      %p184 = por %p182, %p183
      %p185 = scmp.ne.s32.totalorder %s177, %s179
      %p186 = scmp.eq.s32.totalorder %s28, 1
      %p187 = por %p185, %p186
      %p188 = scmp.ne.s32.totalorder %s179, %s180
      %p189 = scmp.eq.s32.totalorder %s28, 0
      %p190 = por %p188, %p189
      %p191 = scmp.ne.s32.totalorder %s179, %s180
      %p192 = scmp.eq.s32.totalorder %s29, 1
      %p193 = por %p191, %p192
      %p195 = scmp.ne.s32.totalorder %s180, %s194
      %p196 = scmp.eq.s32.totalorder %s29, 0
      %p197 = por %p195, %p196
      %s198 = ssub.s32 %s23, 1
      %p199 = scmp.gt.s32.totalorder %s198, 0
      %s200 = scalar_select %p199, %s198, 0
      %s201 = ssub.s32 %s30, 1
      %p202 = scmp.gt.s32.totalorder %s201, 0
      %s203 = scalar_select %p202, %s201, 0
      %s204 = ssub.s32 %s200, %s203
      %p205 = scmp.eq.s32.totalorder %s204, 0
      %s207 = sadd.s32 %s206, 1
      %s208 = scalar_select %p205, %s206, %s207
      %p211 = pneg %p205
      %p212 = scmp.eq.s32.totalorder %s23, 1
      %p213 = por %p211, %p212
      %p214 = scmp.ne.s32.totalorder %s206, %s209
      %p215 = scmp.eq.s32.totalorder %s23, 0
      %p216 = por %p214, %p215
      %p217 = scmp.ne.s32.totalorder %s206, %s209
      %p218 = scmp.eq.s32.totalorder %s28, 1
      %p219 = por %p217, %p218
      %p220 = scmp.ne.s32.totalorder %s209, %s210
      %p221 = scmp.eq.s32.totalorder %s28, 0
      %p222 = por %p220, %p221
      %p223 = scmp.ne.s32.totalorder %s209, %s210
      %p224 = scmp.eq.s32.totalorder %s29, 1
      %p225 = por %p223, %p224
      %p227 = scmp.ne.s32.totalorder %s210, %s226
      %p228 = scmp.eq.s32.totalorder %s29, 0
      %p229 = por %p227, %p228
      %s231 = sadd.s32 %s230, 1
      %p234 = scmp.eq.s32.totalorder %s23, 1
      %p235 = scmp.ne.s32.totalorder %s230, %s232
      %p236 = scmp.eq.s32.totalorder %s23, 0
      %p237 = por %p235, %p236
      %p238 = scmp.ne.s32.totalorder %s230, %s232
      %p239 = scmp.eq.s32.totalorder %s28, 1
      %p240 = por %p238, %p239
      %p241 = scmp.ne.s32.totalorder %s232, %s233
      %p242 = scmp.eq.s32.totalorder %s28, 0
      %p243 = por %p241, %p242
      %p244 = scmp.ne.s32.totalorder %s232, %s233
      %p245 = scmp.eq.s32.totalorder %s29, 1
      %p246 = por %p244, %p245
      %p248 = scmp.ne.s32.totalorder %s233, %s247
      %p249 = scmp.eq.s32.totalorder %s29, 0
      %p250 = por %p248, %p249
      %s252 = sadd.s32 %s251, 1
      %p255 = scmp.eq.s32.totalorder %s23, 1
      %p256 = scmp.ne.s32.totalorder %s251, %s253
      %p257 = scmp.eq.s32.totalorder %s23, 0
      %p258 = por %p256, %p257
      %p259 = scmp.ne.s32.totalorder %s251, %s253
      %p260 = scmp.eq.s32.totalorder %s28, 1
      %p261 = por %p259, %p260
      %p262 = scmp.ne.s32.totalorder %s253, %s254
      %p263 = scmp.eq.s32.totalorder %s28, 0
      %p264 = por %p262, %p263
      %p265 = scmp.ne.s32.totalorder %s253, %s254
      %p266 = scmp.eq.s32.totalorder %s29, 1
      %p267 = por %p265, %p266
      %p269 = scmp.ne.s32.totalorder %s254, %s268
      %p270 = scmp.eq.s32.totalorder %s29, 0
      %p271 = por %p269, %p270
      %p272 = scmp.le.s32.totalorder 1, %s23
      %p273 = scmp.lt.s32.totalorder %s23, 3
      %p274 = pnand %p272, %p273
      %p275 = pneg %p274
      // Predicated region
      $region9: #{tpu_custom_call.1} parent=5 // pred_check
        _
      $region10: #{tpu_custom_call.1} parent=5 // pred_check_branch
        %277 = sbr.rel (%p274) target = $region12
      $region11: #{tpu_custom_call.1} parent=5 // pred_region
        %s278 = ssub.s32 %s23, 1
        // Predicated region
        $region13: #{tpu_custom_call.1} parent=11 // pred_check
          %p279 = pneg %p44
        $region14: #{tpu_custom_call.1} parent=11 // pred_check_branch
          %281 = sbr.rel (%p279) target = $region16
        $region15: #{tpu_custom_call.1} parent=11 // pred_region
          %283 = vsyncadd [#allocation5], 0
          %s285 = sshll.u32 %s0, 4
          %s286 = int_to_ptr.hbm [resolvable:$true] %s285
          %s287 = sshll.u32 [#allocation4], 4
          %s288 = int_to_ptr.vmem [resolvable:$true] %s287
          %290 = dma.hbm_to_vmem [thread:$0]  %s286, 64, %s288, [#allocation5]
        $region16: #{tpu_custom_call.1} parent=11 // pred_fallthru
          _
        // Predicated region
        $region17: #{tpu_custom_call.1} parent=11 // pred_check
          %p291 = pneg %p95
        $region18: #{tpu_custom_call.1} parent=11 // pred_check_branch
          %293 = sbr.rel (%p291) target = $region20
        $region19: #{tpu_custom_call.1} parent=11 // pred_region
          _
        $region20: #{tpu_custom_call.1} parent=11 // pred_fallthru
          _
        // Predicated region
        $region21: #{tpu_custom_call.1} parent=11 // pred_check
          %p294 = pneg %p116
        $region22: #{tpu_custom_call.1} parent=11 // pred_check_branch
          %296 = sbr.rel (%p294) target = $region24
        $region23: #{tpu_custom_call.1} parent=11 // pred_region
          _
        $region24: #{tpu_custom_call.1} parent=11 // pred_fallthru
          _
        // Predicated region
        $region25: #{tpu_custom_call.1} parent=11 // pred_check
          %p297 = pneg %p169
        $region26: #{tpu_custom_call.1} parent=11 // pred_check_branch
          %299 = sbr.rel (%p297) target = $region28
        $region27: #{tpu_custom_call.1} parent=11 // pred_region
          _
        $region28: #{tpu_custom_call.1} parent=11 // pred_fallthru
          _
        // Predicated region
        $region29: #{tpu_custom_call.1} parent=11 // pred_check
          %p300 = pneg %p190
        $region30: #{tpu_custom_call.1} parent=11 // pred_check_branch
          %302 = sbr.rel (%p300) target = $region32
        $region31: #{tpu_custom_call.1} parent=11 // pred_region
          _
        $region32: #{tpu_custom_call.1} parent=11 // pred_fallthru
          _
        // Predicated region
        $region33: #{tpu_custom_call.1} parent=11 // pred_check
          %p303 = pneg %p243
        $region34: #{tpu_custom_call.1} parent=11 // pred_check_branch
          %305 = sbr.rel (%p303) target = $region36
        $region35: #{tpu_custom_call.1} parent=11 // pred_region
          _
        $region36: #{tpu_custom_call.1} parent=11 // pred_fallthru
          _
      $region12: #{tpu_custom_call.1} parent=5 // pred_fallthru
        _
      %p306 = scmp.lt.s32.totalorder %s23, 2
      // Predicated region
      $region37: #{tpu_custom_call.1} parent=5 // pred_check
        %p307 = pneg %p306
      $region38: #{tpu_custom_call.1} parent=5 // pred_check_branch
        %309 = sbr.rel (%p307) target = $region40
      $region39: #{tpu_custom_call.1} parent=5 // pred_region
        // Predicated region
        $region41: #{tpu_custom_call.1} parent=39 // pred_check
          %p310 = pneg %p68
        $region42: #{tpu_custom_call.1} parent=39 // pred_check_branch
          %312 = sbr.rel (%p310) target = $region44
        $region43: #{tpu_custom_call.1} parent=39 // pred_region
          %s313 = sand.u32 %s23, 1
          %s314 = scalar_lea.sflag [#allocation8], %s313
          %s315 = sand.u32 %s58, 1
          %s316 = smul.addr %s315, 16
          %s317 = scalar_lea.vmem [#allocation7], %s316
          %p318 = scmp.lt.s32.totalorder %s23, 0
          %s319 = scalar_select %p318, %s23, 0
          %321 = vsyncadd %s314, 0
          %s322 = smul.addr %s319, 4
          %s323 = scalar_lea.hbm %s1, %s322
          %s324 = sshll.u32 %s323, 4
          %s325 = int_to_ptr.hbm [resolvable:$true] %s324
          %s326 = sshll.u32 %s317, 4
          %s327 = int_to_ptr.vmem [resolvable:$true] %s326
          %332 = dma.hbm_to_vmem [thread:$0]  %s325, 256, %s327, %s314, 64, 64, 4
        $region44: #{tpu_custom_call.1} parent=39 // pred_fallthru
          _
        // Predicated region
        $region45: #{tpu_custom_call.1} parent=39 // pred_check
          %p333 = pneg %p142
        $region46: #{tpu_custom_call.1} parent=39 // pred_check_branch
          %335 = sbr.rel (%p333) target = $region48
        $region47: #{tpu_custom_call.1} parent=39 // pred_region
          %s336 = sand.u32 %s23, 1
          %s337 = scalar_lea.sflag [#allocation8], %s336
          %s338 = sand.u32 %s132, 1
          %s339 = smul.addr %s338, 64
          %s340 = scalar_lea.vmem [#allocation9], %s339
          %s341 = ssub.s32 %s23, 1
          %p342 = scmp.gt.s32.totalorder %s341, 0
          %s343 = scalar_select %p342, %s341, 0
          %345 = vsyncadd %s337, 0
          %s346 = smul.addr %s343, 4
          %s347 = scalar_lea.hbm %s4, %s346
          %s348 = sshll.u32 %s347, 4
          %s349 = int_to_ptr.hbm [resolvable:$true] %s348
          %s350 = sshll.u32 %s340, 4
          %s351 = int_to_ptr.vmem [resolvable:$true] %s350
          %356 = dma.hbm_to_vmem [thread:$0]  %s349, 1024, %s351, %s337, 64, 64, 4
        $region48: #{tpu_custom_call.1} parent=39 // pred_fallthru
          _
        // Predicated region
        $region49: #{tpu_custom_call.1} parent=39 // pred_check
          %p357 = pneg %p216
        $region50: #{tpu_custom_call.1} parent=39 // pred_check_branch
          %359 = sbr.rel (%p357) target = $region52
        $region51: #{tpu_custom_call.1} parent=39 // pred_region
          %s360 = sand.u32 %s206, 1
          %s361 = scalar_lea.sflag [#allocation11], %s360
          %s362 = sand.u32 %s206, 1
          %s363 = smul.addr %s362, 64
          %s364 = scalar_lea.vmem [#allocation10], %s363
          %s365 = ssub.s32 %s23, 1
          %p366 = scmp.gt.s32.totalorder %s365, 0
          %s367 = scalar_select %p366, %s365, 0
          %s368 = smul.u32 16, %s367
          %370 = vsyncadd %s361, 0
          %s371 = smul.addr %s368, 4
          %s372 = scalar_lea.hbm %s7, %s371
          %s373 = sshll.u32 %s372, 4
          %s374 = int_to_ptr.hbm [resolvable:$true] %s373
          %s375 = sshll.u32 %s364, 4
          %s376 = int_to_ptr.vmem [resolvable:$true] %s375
          %381 = dma.hbm_to_vmem [thread:$0]  %s374, 1024, %s376, %s361, 64, 64, 4
        $region52: #{tpu_custom_call.1} parent=39 // pred_fallthru
          _
      $region40: #{tpu_custom_call.1} parent=5 // pred_fallthru
        _
      %p382 = scmp.le.s32.totalorder 1, %s23
      %p383 = scmp.lt.s32.totalorder %s23, 3
      %p384 = pnand %p382, %p383
      %p385 = pneg %p384
      // Predicated region
      $region53: #{tpu_custom_call.1} parent=5 // pred_check
        _
      $region54: #{tpu_custom_call.1} parent=5 // pred_check_branch
        %387 = sbr.rel (%p384) target = $region56
      $region55: #{tpu_custom_call.1} parent=5 // pred_region
        %s388 = ssub.s32 %s23, 1
        // Predicated region
        $region57: #{tpu_custom_call.1} parent=55 // pred_check
          %p389 = pneg %p44
        $region58: #{tpu_custom_call.1} parent=55 // pred_check_branch
          %391 = sbr.rel (%p389) target = $region60
        $region59: #{tpu_custom_call.1} parent=55 // pred_region
          %393 = dma.done [#allocation5], 64
        $region60: #{tpu_custom_call.1} parent=55 // pred_fallthru
          _
        %s394 = sand.u32 %s28, 1
        %s395 = scalar_lea.sflag [#allocation8], %s394
        %s396 = sand.u32 %s61, 1
        %s397 = smul.addr %s396, 16
        %s398 = scalar_lea.vmem [#allocation7], %s397
        // Predicated region
        $region61: #{tpu_custom_call.1} parent=55 // pred_check
          %p399 = pneg %p74
        $region62: #{tpu_custom_call.1} parent=55 // pred_check_branch
          %401 = sbr.rel (%p399) target = $region64
        $region63: #{tpu_custom_call.1} parent=55 // pred_region
          %403 = dma.done %s395, 256
        $region64: #{tpu_custom_call.1} parent=55 // pred_fallthru
          _
        %s404 = sand.u32 %s28, 1
        %s405 = scalar_lea.sflag [#allocation8], %s404
        %s406 = sand.u32 %s135, 1
        %s407 = smul.addr %s406, 64
        %s408 = scalar_lea.vmem [#allocation9], %s407
        // Predicated region
        $region65: #{tpu_custom_call.1} parent=55 // pred_check
          %p409 = pneg %p148
        $region66: #{tpu_custom_call.1} parent=55 // pred_check_branch
          %411 = sbr.rel (%p409) target = $region68
        $region67: #{tpu_custom_call.1} parent=55 // pred_region
          %413 = dma.done %s405, 1024
        $region68: #{tpu_custom_call.1} parent=55 // pred_fallthru
          _
        %s414 = sand.u32 %s209, 1
        %s415 = scalar_lea.sflag [#allocation11], %s414
        %s416 = sand.u32 %s209, 1
        %s417 = smul.addr %s416, 64
        %s418 = scalar_lea.vmem [#allocation10], %s417
        // Predicated region
        $region69: #{tpu_custom_call.1} parent=55 // pred_check
          %p419 = pneg %p222
        $region70: #{tpu_custom_call.1} parent=55 // pred_check_branch
          %421 = sbr.rel (%p419) target = $region72
        $region71: #{tpu_custom_call.1} parent=55 // pred_region
          %423 = dma.done %s415, 1024
        $region72: #{tpu_custom_call.1} parent=55 // pred_fallthru
          _
        %p424 = pneg %p44
        %p425 = pneg %p41
        %s426 = sand.u32 %s28, 1
        %s427 = scalar_lea.sflag [#allocation8], %s426
        %s428 = sand.u32 %s61, 1
        %s429 = smul.addr %s428, 16
        %s430 = scalar_lea.vmem [#allocation7], %s429
        %p431 = pneg %p74
        %p432 = pneg %p71
        %p433 = pneg %p95
        %p434 = pneg %p92
        %p435 = pneg %p116
        %p436 = pneg %p113
        %s437 = sand.u32 %s28, 1
        %s438 = scalar_lea.sflag [#allocation8], %s437
        %s439 = sand.u32 %s135, 1
        %s440 = smul.addr %s439, 64
        %s441 = scalar_lea.vmem [#allocation9], %s440
        %p442 = pneg %p148
        %p443 = pneg %p145
        %p444 = pneg %p169
        %p445 = pneg %p166
        %p446 = pneg %p190
        %p447 = pneg %p187
        %s448 = sand.u32 %s209, 1
        %s449 = scalar_lea.sflag [#allocation11], %s448
        %s450 = sand.u32 %s209, 1
        %s451 = smul.addr %s450, 64
        %s452 = scalar_lea.vmem [#allocation10], %s451
        %p453 = pneg %p222
        %p454 = pneg %p219
        %p455 = pneg %p243
        %p456 = pneg %p240
        %p457 = pneg %p264
        %p458 = pneg %p261
        %p459 = scmp.lt.s32.totalorder %s28, 0
        %s460 = scalar_select %p459, %s28, 0
        %s461 = ssub.s32 %s28, 1
        %p462 = scmp.gt.s32.totalorder %s461, 0
        %s463 = scalar_select %p462, %s461, 0
        %s464 = ssub.s32 %s28, 1
        %p465 = scmp.gt.s32.totalorder %s464, 0
        %s466 = scalar_select %p465, %s464, 0
        %s467 = smul.u32 16, %s466
        %p469 = scmp.lt.s32.totalorder %s28, 1
        // Predicated region
        $region73: #{tpu_custom_call.1} parent=55 // pred_check
          %p470 = pneg %p469
        $region74: #{tpu_custom_call.1} parent=55 // pred_check_branch
          %472 = sbr.rel (%p470) target = $region76
        $region75: #{tpu_custom_call.1} parent=55 // pred_region
          %s473 = smul.u32 %s28, 128
          %v474 = vld [vmem:[#allocation4] sm:$0xf]
          %v475 = vld [vmem:[%s398] sm:$0xf]
          %v476 = vld [vmem:[%s398 + $0x4] sm:$0xf]
          %v477 = vld [vmem:[%s398 + $0x8] sm:$0xf]
          %v478 = vld [vmem:[%s398 + $0xc] sm:$0xf]
          %v483 = vunpack.c.l.b16 %v475
          %v484 = vunpack.c.l.b16 %v476
          %v485 = vunpack.c.l.b16 %v477
          %v486 = vunpack.c.l.b16 %v478
          %v487 = vpack.c.b16 %v484, %v483
          %v488 = vpack.c.b16 %v486, %v485
          %vm491 = vcmask 261120
          %v493 = vsel %vm491, %v474, 0
          %495 = vmatpush.bf16.msra.mxu0 0
          %496 = vmatpush.bf16.msra.mxu0 0
          %497 = vmatpush.bf16.msra.mxu0 0
          %498 = vmatpush.bf16.msra.mxu0 0
          %499 = vmatpush.bf16.msra.mxu0 0
          %500 = vmatpush.bf16.msra.mxu0 0
          %501 = vmatpush.bf16.msra.mxu0 %v488
          %502 = vmatpush.bf16.msra.mxu0 %v487
          %503 = vmatmul.bf16.gmra.mxu0 %v493
          %v504 = vpop.f32.mrf.mxu0
          %v505 = vadd.f32 0.0, %v504
          %v506 = vpop.f32.mrf.mxu0
          %507 = vdwg.mxu0
          %v508 = vrot.slane %v505, 4
          %v509 = vadd.f32 %v505, %v508
          %v510 = vrot.slane %v509, 2
          %v511 = vadd.f32 %v509, %v510
          %v512 = vrot.slane %v511, 1
          %v513 = vadd.f32 %v511, %v512
          %v514 = vrcp.pop 8.0
          %v515 = vmul.f32 8.0, %v514
          %v516 = vsub.f32 1.0, %v515
          %v517 = vmul.f32 %v514, %v516
          %v518 = vadd.f32 %v514, %v517
          %vm519 = vweird.f32 %v514
          %v520 = vsel %vm519, %v514, %v518
          %v521 = vmul.f32 %v513, %v520
          %v522 = vsub.f32 %v505, %v521
          %v523 = vmul.f32 %v522, %v522
          %v524 = vrot.slane %v523, 4
          %v525 = vadd.f32 %v523, %v524
          %v526 = vrot.slane %v525, 2
          %v527 = vadd.f32 %v525, %v526
          %v528 = vrot.slane %v527, 1
          %v529 = vadd.f32 %v527, %v528
          %v530 = vmul.f32 %v529, %v520
          %s531 = sshra.s32 %s473, 7
          %s532 = sand.u32 %s473, 127
          %s533 = scalar_lea.vmem %s2, %s531
          %v534 = vld [vmem:[%s533] sm:$0x1]
          %v535 = vadd.f32 %v530, 1e-05
          %v536 = vrsqrt.pop %v535
          %v537 = vmul.f32 %v536, %v535
          %v538 = vmul.f32 %v537, %v536
          %v539 = vmul.f32 0.5, %v538
          %v540 = vsub.f32 1.5, %v539
          %v541 = vmul.f32 %v536, %v540
          %vm542 = vweird.f32 %v535
          %vm543 = vweird.f32 %v536
          %vm544 = vmor %vm542, %vm543
          %v545 = vsel %vm544, %v536, %v541
          %v546 = vmul.f32 %v534, %v545
          %s547 = scalar_lea.vmem %s3, %s531
          %v548 = vld [vmem:[%s547] sm:$0x1]
          %v549 = vmul.f32 %v521, %v546
          %v550 = vsub.f32 %v548, %v549
          %v552 = vperm.slane %v546, 0
          %v554 = vmul.f32 %v505, %v552
          %v556 = vperm.slane %v550, 0
          %v558 = vadd.f32 %v554, %v556
          %v559 = vmax.f32 %v558, 0.0
          %v560 = vpack.c.bf16 %v559, %v559
          %s561 = smul.addr %s531, 4
          %s562 = scalar_lea.vmem [#allocation2], %s561
          %563 = vst [vmem:[%s562] sm:$0xf] %v560
        $region76: #{tpu_custom_call.1} parent=55 // pred_fallthru
          _
        %p564 = scmp.ge.s32.totalorder %s28, 1
        // Predicated region
        $region77: #{tpu_custom_call.1} parent=55 // pred_check
          %p565 = pneg %p564
        $region78: #{tpu_custom_call.1} parent=55 // pred_check_branch
          %567 = sbr.rel (%p565) target = $region80
        $region79: #{tpu_custom_call.1} parent=55 // pred_region
          %s568 = ssub.s32 %s28, 1
          %s569 = smul.u32 %s568, 128
          %v570 = vld [vmem:[#allocation2] sm:$0xf]
          %v571 = vld [vmem:[%s408] sm:$0xf]
          %v572 = vld [vmem:[%s408 + $0x4] sm:$0xf]
          %v573 = vld [vmem:[%s408 + $0x8] sm:$0xf]
          %v574 = vld [vmem:[%s408 + $0xc] sm:$0xf]
          %v575 = vld [vmem:[%s408 + $0x10] sm:$0xf]
          %v576 = vld [vmem:[%s408 + $0x14] sm:$0xf]
          %v577 = vld [vmem:[%s408 + $0x18] sm:$0xf]
          %v578 = vld [vmem:[%s408 + $0x1c] sm:$0xf]
          %v579 = vld [vmem:[%s408 + $0x20] sm:$0xf]
          %v580 = vld [vmem:[%s408 + $0x24] sm:$0xf]
          %v581 = vld [vmem:[%s408 + $0x28] sm:$0xf]
          %v582 = vld [vmem:[%s408 + $0x2c] sm:$0xf]
          %v583 = vld [vmem:[%s408 + $0x30] sm:$0xf]
          %v584 = vld [vmem:[%s408 + $0x34] sm:$0xf]
          %v585 = vld [vmem:[%s408 + $0x38] sm:$0xf]
          %v586 = vld [vmem:[%s408 + $0x3c] sm:$0xf]
          %v603 = vunpack.c.l.b16 %v571
          %v604 = vunpack.c.l.b16 %v572
          %v605 = vunpack.c.l.b16 %v573
          %v606 = vunpack.c.l.b16 %v574
          %v607 = vunpack.c.l.b16 %v575
          %v608 = vunpack.c.l.b16 %v576
          %v609 = vunpack.c.l.b16 %v577
          %v610 = vunpack.c.l.b16 %v578
          %v611 = vunpack.c.l.b16 %v579
          %v612 = vunpack.c.l.b16 %v580
          %v613 = vunpack.c.l.b16 %v581
          %v614 = vunpack.c.l.b16 %v582
          %v615 = vunpack.c.l.b16 %v583
          %v616 = vunpack.c.l.b16 %v584
          %v617 = vunpack.c.l.b16 %v585
          %v618 = vunpack.c.l.b16 %v586
          %v619 = vpack.c.b16 %v604, %v603
          %v620 = vpack.c.b16 %v606, %v605
          %v621 = vpack.c.b16 %v608, %v607
          %v622 = vpack.c.b16 %v610, %v609
          %v623 = vpack.c.b16 %v612, %v611
          %v624 = vpack.c.b16 %v614, %v613
          %v625 = vpack.c.b16 %v616, %v615
          %v626 = vpack.c.b16 %v618, %v617
          %635 = vmatpush.bf16.msra.mxu0 %v626
          %636 = vmatpush.bf16.msra.mxu0 %v625
          %637 = vmatpush.bf16.msra.mxu0 %v624
          %638 = vmatpush.bf16.msra.mxu0 %v623
          %639 = vmatpush.bf16.msra.mxu0 %v622
          %640 = vmatpush.bf16.msra.mxu0 %v621
          %641 = vmatpush.bf16.msra.mxu0 %v620
          %642 = vmatpush.bf16.msra.mxu0 %v619
          %643 = vmatmul.bf16.gmra.mxu0 %v570
          %v644 = vpop.f32.mrf.mxu0
          %v645 = vadd.f32 0.0, %v644
          %v646 = vpop.f32.mrf.mxu0
          %647 = vdwg.mxu0
          %v648 = vrot.slane %v645, 4
          %v649 = vadd.f32 %v645, %v648
          %v650 = vrot.slane %v649, 2
          %v651 = vadd.f32 %v649, %v650
          %v652 = vrot.slane %v651, 1
          %v653 = vadd.f32 %v651, %v652
          %v654 = vrcp.pop 8.0
          %v655 = vmul.f32 8.0, %v654
          %v656 = vsub.f32 1.0, %v655
          %v657 = vmul.f32 %v654, %v656
          %v658 = vadd.f32 %v654, %v657
          %vm659 = vweird.f32 %v654
          %v660 = vsel %vm659, %v654, %v658
          %v661 = vmul.f32 %v653, %v660
          %v662 = vsub.f32 %v645, %v661
          %v663 = vmul.f32 %v662, %v662
          %v664 = vrot.slane %v663, 4
          %v665 = vadd.f32 %v663, %v664
          %v666 = vrot.slane %v665, 2
          %v667 = vadd.f32 %v665, %v666
          %v668 = vrot.slane %v667, 1
          %v669 = vadd.f32 %v667, %v668
          %v670 = vmul.f32 %v669, %v660
          %s671 = sshra.s32 %s569, 7
          %s672 = sand.u32 %s569, 127
          %s673 = scalar_lea.vmem %s5, %s671
          %v674 = vld [vmem:[%s673] sm:$0x1]
          %v675 = vadd.f32 %v670, 1e-05
          %v676 = vrsqrt.pop %v675
          %v677 = vmul.f32 %v676, %v675
          %v678 = vmul.f32 %v677, %v676
          %v679 = vmul.f32 0.5, %v678
          %v680 = vsub.f32 1.5, %v679
          %v681 = vmul.f32 %v676, %v680
          %vm682 = vweird.f32 %v675
          %vm683 = vweird.f32 %v676
          %vm684 = vmor %vm682, %vm683
          %v685 = vsel %vm684, %v676, %v681
          %v686 = vmul.f32 %v674, %v685
          %s687 = scalar_lea.vmem %s6, %s671
          %v688 = vld [vmem:[%s687] sm:$0x1]
          %v689 = vmul.f32 %v661, %v686
          %v690 = vsub.f32 %v688, %v689
          %v692 = vperm.slane %v686, 0
          %v694 = vmul.f32 %v645, %v692
          %v696 = vperm.slane %v690, 0
          %v698 = vadd.f32 %v694, %v696
          %v699 = vmax.f32 %v698, 0.0
          %v700 = vpack.c.bf16 %v699, %v699
          %v701 = vld [vmem:[%s418] sm:$0xf]
          %v702 = vld [vmem:[%s418 + $0x4] sm:$0xf]
          %v703 = vld [vmem:[%s418 + $0x8] sm:$0xf]
          %v704 = vld [vmem:[%s418 + $0xc] sm:$0xf]
          %v705 = vld [vmem:[%s418 + $0x10] sm:$0xf]
          %v706 = vld [vmem:[%s418 + $0x14] sm:$0xf]
          %v707 = vld [vmem:[%s418 + $0x18] sm:$0xf]
          %v708 = vld [vmem:[%s418 + $0x1c] sm:$0xf]
          %v709 = vld [vmem:[%s418 + $0x20] sm:$0xf]
          %v710 = vld [vmem:[%s418 + $0x24] sm:$0xf]
          %v711 = vld [vmem:[%s418 + $0x28] sm:$0xf]
          %v712 = vld [vmem:[%s418 + $0x2c] sm:$0xf]
          %v713 = vld [vmem:[%s418 + $0x30] sm:$0xf]
          %v714 = vld [vmem:[%s418 + $0x34] sm:$0xf]
          %v715 = vld [vmem:[%s418 + $0x38] sm:$0xf]
          %v716 = vld [vmem:[%s418 + $0x3c] sm:$0xf]
          %v733 = vunpack.c.l.b16 %v701
          %v734 = vunpack.c.l.b16 %v702
          %v735 = vunpack.c.l.b16 %v703
          %v736 = vunpack.c.l.b16 %v704
          %v737 = vunpack.c.l.b16 %v705
          %v738 = vunpack.c.l.b16 %v706
          %v739 = vunpack.c.l.b16 %v707
          %v740 = vunpack.c.l.b16 %v708
          %v741 = vunpack.c.l.b16 %v709
          %v742 = vunpack.c.l.b16 %v710
          %v743 = vunpack.c.l.b16 %v711
          %v744 = vunpack.c.l.b16 %v712
          %v745 = vunpack.c.l.b16 %v713
          %v746 = vunpack.c.l.b16 %v714
          %v747 = vunpack.c.l.b16 %v715
          %v748 = vunpack.c.l.b16 %v716
          %v749 = vpack.c.b16 %v734, %v733
          %v750 = vpack.c.b16 %v736, %v735
          %v751 = vpack.c.b16 %v738, %v737
          %v752 = vpack.c.b16 %v740, %v739
          %v753 = vpack.c.b16 %v742, %v741
          %v754 = vpack.c.b16 %v744, %v743
          %v755 = vpack.c.b16 %v746, %v745
          %v756 = vpack.c.b16 %v748, %v747
          %765 = vmatpush.bf16.msra.mxu0 %v756
          %766 = vmatpush.bf16.msra.mxu0 %v755
          %767 = vmatpush.bf16.msra.mxu0 %v754
          %768 = vmatpush.bf16.msra.mxu0 %v753
          %769 = vmatpush.bf16.msra.mxu0 %v752
          %770 = vmatpush.bf16.msra.mxu0 %v751
          %771 = vmatpush.bf16.msra.mxu0 %v750
          %772 = vmatpush.bf16.msra.mxu0 %v749
          %773 = vmatmul.bf16.gmra.mxu0 %v700
          %v774 = vpop.f32.mrf.mxu0
          %v775 = vadd.f32 0.0, %v774
          %v776 = vpop.f32.mrf.mxu0
          %777 = vdwg.mxu0
          %p778 = scmp.eq.s32.totalorder %s568, 0
          // Predicated region
          $region81: #{tpu_custom_call.1} parent=79 // pred_check
            %p779 = pneg %p778
          $region82: #{tpu_custom_call.1} parent=79 // pred_check_branch
            %781 = sbr.rel (%p779) target = $region84
          $region83: #{tpu_custom_call.1} parent=79 // pred_region
            %v782 = vld [vmem:[%s8] sm:$0x1]
            %v784 = vperm.slane %v782, 0
            %v786 = vadd.f32 %v775, %v784
            %787 = vst [vmem:[#allocation3] sm:$0xff] %v786
          $region84: #{tpu_custom_call.1} parent=79 // pred_fallthru
            _
          %p788 = scmp.gt.s32.totalorder %s568, 0
          // Predicated region
          $region85: #{tpu_custom_call.1} parent=79 // pred_check
            %p789 = pneg %p788
          $region86: #{tpu_custom_call.1} parent=79 // pred_check_branch
            %791 = sbr.rel (%p789) target = $region88
          $region87: #{tpu_custom_call.1} parent=79 // pred_region
            %v792 = vld [vmem:[#allocation3] sm:$0xff]
            %v793 = vadd.f32 %v792, %v775
            %794 = vst [vmem:[#allocation3] sm:$0xff] %v793
          $region88: #{tpu_custom_call.1} parent=79 // pred_fallthru
            _
          %p795 = scmp.eq.s32.totalorder %s28, 1
          // Predicated region
          $region89: #{tpu_custom_call.1} parent=79 // pred_check
            %p796 = pneg %p795
          $region90: #{tpu_custom_call.1} parent=79 // pred_check_branch
            %798 = sbr.rel (%p796) target = $region92
          $region91: #{tpu_custom_call.1} parent=79 // pred_region
            %v799 = vld [vmem:[#allocation3] sm:$0xff]
            %800 = vst [vmem:[#allocation12] sm:$0xff] %v799
          $region92: #{tpu_custom_call.1} parent=79 // pred_fallthru
            _
        $region80: #{tpu_custom_call.1} parent=55 // pred_fallthru
          _
        // Predicated region
        $region93: #{tpu_custom_call.1} parent=55 // pred_check
          %p801 = pneg %p261
        $region94: #{tpu_custom_call.1} parent=55 // pred_check_branch
          %803 = sbr.rel (%p801) target = $region96
        $region95: #{tpu_custom_call.1} parent=55 // pred_region
          %805 = vsyncadd [#allocation6], 0
          %s807 = sshll.u32 [#allocation12], 4
          %s808 = int_to_ptr.vmem [resolvable:$true] %s807
          %s809 = sshll.u32 %s9, 4
          %s810 = int_to_ptr.hbm [resolvable:$true] %s809
          %812 = dma.vmem_to_hbm [thread:$0]  %s808, 128, %s810, [#allocation6]
        $region96: #{tpu_custom_call.1} parent=55 // pred_fallthru
          _
        // Predicated region
        $region97: #{tpu_custom_call.1} parent=55 // pred_check
          %p813 = pneg %p261
        $region98: #{tpu_custom_call.1} parent=55 // pred_check_branch
          %815 = sbr.rel (%p813) target = $region100
        $region99: #{tpu_custom_call.1} parent=55 // pred_region
          %817 = dma.done [#allocation6], 128
        $region100: #{tpu_custom_call.1} parent=55 // pred_fallthru
          _
      $region56: #{tpu_custom_call.1} parent=5 // pred_fallthru
        _
      %p818 = scmp.le.s32.totalorder 2, %s23
      // Predicated region
      $region101: #{tpu_custom_call.1} parent=5 // pred_check
        %p819 = pneg %p818
      $region102: #{tpu_custom_call.1} parent=5 // pred_check_branch
        %821 = sbr.rel (%p819) target = $region104
      $region103: #{tpu_custom_call.1} parent=5 // pred_region
        %s822 = ssub.s32 %s23, 2
      $region104: #{tpu_custom_call.1} parent=5 // pred_fallthru
        _
    $region6: #{tpu_custom_call.1} parent=1 // loop_footer
      %s27 = sadd.s32 1, %s23
    $region7: #{tpu_custom_call.1} parent=1 // loop_footer_branch
      %22 = sbr.rel target = $region3
    $region8: #{tpu_custom_call.1} parent=1 // loop_exit
      _
    %823 = vsyncpa [#allocation5], 1
    %s824 = scalar_lea.sflag [#allocation5], 1
    %825 = vsyncpa %s824, 1
    %826 = vsyncpa [#allocation8], 1
    %s827 = scalar_lea.sflag [#allocation8], 1
    %828 = vsyncpa %s827, 1
    %829 = vsyncpa [#allocation11], 1
    %s830 = scalar_lea.sflag [#allocation11], 1
    %831 = vsyncpa %s830, 1
    %832 = vsyncpa [#allocation6], 1
    %s833 = scalar_lea.sflag [#allocation6], 1
    %834 = vsyncpa %s833, 1

// kernel: tpu_custom_call.1
$region0: #{tpu_custom_call.1}
  #allocation0 [shape = 'u32[]', space=smem, size = 0x4, offset = 0x4, fixed_abs, tag = 'smem constant byte address 0x4 - core index']
  #allocation1 [shape = 'u32[72,128]{1,0:T(1,128)}', space=vmem, size = 0x9000, scoped, tag = 'internal scratch']
  #allocation2 [shape = 'bf16[8,128]{1,0:T(8,128)(2,1)}', space=vmem, size = 0x800, scoped, tag = 'scratch operand']
  #allocation3 [shape = 'f32[8,128]{1,0:T(8,128)}', space=vmem, size = 0x1000, scoped, tag = 'scratch operand']
  %s0 = inlined_call_operand.hbm [shape: bf16[8,32], index: 0, kind: input, shape index: {}]
  %s1 = inlined_call_operand.hbm [shape: bf16[32,128], index: 1, kind: input, shape index: {}]
  %s2 = inlined_call_operand.vmem [shape: f32[1,128], index: 2, kind: input, shape index: {}]
  %s3 = inlined_call_operand.vmem [shape: f32[1,128], index: 3, kind: input, shape index: {}]
  %s4 = inlined_call_operand.hbm [shape: bf16[128,128], index: 4, kind: input, shape index: {}]
  %s5 = inlined_call_operand.vmem [shape: f32[1,128], index: 5, kind: input, shape index: {}]
  %s6 = inlined_call_operand.vmem [shape: f32[1,128], index: 6, kind: input, shape index: {}]
  %s7 = inlined_call_operand.hbm [shape: bf16[128,128], index: 7, kind: input, shape index: {}]
  %s8 = inlined_call_operand.vmem [shape: f32[1,128], index: 8, kind: input, shape index: {}]
  %s9 = inlined_call_operand.hbm [shape: f32[8,128], index: 9, kind: output, shape index: {}]
  %s10 = sld [smem:[#allocation0]]
  $region105: #{tpu_custom_call.1} parent=0
    _
  %s12 = ssub.s32 1, %s10
  %s13 = scalar_select 0, %s12, %s10
  $region1: #{tpu_custom_call.1} parent=0
    #allocation4 [shape = 'u8[2048]{0}', space=vmem, size = 0x800, scoped, tag = 'input window, operand 0, single buffered']
    #allocation5 [shape = 's32[2]{0}', space=sflag, size = 0x8, scoped, tag = 'scoped memory for tpu_custom_call.1']
    #allocation6 [shape = 's32[2]{0}', space=sflag, size = 0x8, scoped, tag = 'scoped memory for tpu_custom_call.1']
    #allocation7 [shape = 'u8[16384]{0}', space=vmem, size = 0x4000, scoped, tag = 'input window, operand 1']
    #allocation8 [shape = 's32[2]{0}', space=sflag, size = 0x8, scoped, tag = 'scoped memory for tpu_custom_call.1']
    #allocation9 [shape = 'u8[65536]{0}', space=vmem, size = 0x10000, scoped, tag = 'input window, operand 4']
    #allocation10 [shape = 'u8[65536]{0}', space=vmem, size = 0x10000, scoped, tag = 'input window, operand 7']
    #allocation11 [shape = 's32[2]{0}', space=sflag, size = 0x8, scoped, tag = 'scoped memory for tpu_custom_call.1']
    #allocation12 [shape = 'u8[4096]{0}', space=vmem, size = 0x1000, scoped, tag = 'output window, operand 0, single buffered']
    %14 = vsyncpa [#allocation5], 0
    %15 = vsyncpa [#allocation8], 0
    %s16 = scalar_lea.sflag [#allocation8], 1
    %17 = vsyncpa %s16, 0
    %18 = vsyncpa [#allocation11], 0
    %s19 = scalar_lea.sflag [#allocation11], 1
    %20 = vsyncpa %s19, 0
    %21 = vsyncpa [#allocation6], 0
    loop: start=0, step=1, limit=4
    $region2: #{tpu_custom_call.1} parent=1 // loop_pre_header
      _
    $region3: #{tpu_custom_call.1} parent=1 // loop_header
      %s23 = sphi 0, %s27
      %p24 = scmp.ge.s32.totalorder %s23, 4
      %s31 = sphi 0, %s31
      %s33 = sphi 0, %s31
      %s34 = sphi 0, %s33
      %s48 = sphi 0, %s34
      %s58 = sphi 0, %s60
      %s61 = sphi 0, %s58
      %s62 = sphi 0, %s61
      %s78 = sphi 0, %s62
      %s82 = sphi 0, %s82
      %s84 = sphi 0, %s82
      %s85 = sphi 0, %s84
      %s99 = sphi 0, %s85
      %s103 = sphi 0, %s103
      %s105 = sphi 0, %s103
      %s106 = sphi 0, %s105
      %s120 = sphi 0, %s106
      %s132 = sphi 0, %s134
      %s135 = sphi 0, %s132
      %s136 = sphi 0, %s135
      %s152 = sphi 0, %s136
      %s156 = sphi 0, %s156
      %s158 = sphi 0, %s156
      %s159 = sphi 0, %s158
      %s173 = sphi 0, %s159
      %s177 = sphi 0, %s177
      %s179 = sphi 0, %s177
      %s180 = sphi 0, %s179
      %s194 = sphi 0, %s180
      %s206 = sphi 0, %s208
      %s209 = sphi 0, %s206
      %s210 = sphi 0, %s209
      %s226 = sphi 0, %s210
      %s230 = sphi 0, %s230
      %s232 = sphi 0, %s230
      %s233 = sphi 0, %s232
      %s247 = sphi 0, %s233
      %s251 = sphi 0, %s251
      %s253 = sphi 0, %s251
      %s254 = sphi 0, %s253
      %s268 = sphi 0, %s254
    $region4: #{tpu_custom_call.1} parent=1 // loop_header_branch
      %26 = sbr.rel (%p24) target = $region8
    $region5: #{tpu_custom_call.1} parent=1 // loop_body
      %s28 = ssub.s32 %s23, 1
      %s29 = ssub.s32 %s23, 2
      %s30 = sadd.s32 %s23, 1
      %s32 = sadd.s32 %s31, 1
      %p35 = scmp.eq.s32.totalorder %s23, 1
      %p36 = scmp.ne.s32.totalorder %s31, %s33
      %p37 = scmp.eq.s32.totalorder %s23, 0
      %p38 = por %p36, %p37
      %p39 = scmp.ne.s32.totalorder %s31, %s33
      %p40 = scmp.eq.s32.totalorder %s28, 1
      %p41 = por %p39, %p40
      %p42 = scmp.ne.s32.totalorder %s33, %s34
      %p43 = scmp.eq.s32.totalorder %s28, 0
      %p44 = por %p42, %p43
      %p45 = scmp.ne.s32.totalorder %s33, %s34
      %p46 = scmp.eq.s32.totalorder %s29, 1
      %p47 = por %p45, %p46
      %p49 = scmp.ne.s32.totalorder %s34, %s48
      %p50 = scmp.eq.s32.totalorder %s29, 0
      %p51 = por %p49, %p50
      %p52 = scmp.lt.s32.totalorder %s23, 0
      %s53 = scalar_select %p52, %s23, 0
      %p54 = scmp.lt.s32.totalorder %s30, 0
      %s55 = scalar_select %p54, %s30, 0
      %s56 = ssub.s32 %s53, %s55
      %p57 = scmp.eq.s32.totalorder %s56, 0
      %s59 = sadd.s32 %s58, 1
      %s60 = scalar_select %p57, %s58, %s59
      %p63 = pneg %p57
      %p64 = scmp.eq.s32.totalorder %s23, 1
      %p65 = por %p63, %p64
      %p66 = scmp.ne.s32.totalorder %s58, %s61
      %p67 = scmp.eq.s32.totalorder %s23, 0
      %p68 = por %p66, %p67
      %p69 = scmp.ne.s32.totalorder %s58, %s61
      %p70 = scmp.eq.s32.totalorder %s28, 1
      %p71 = por %p69, %p70
      %p72 = scmp.ne.s32.totalorder %s61, %s62
      %p73 = scmp.eq.s32.totalorder %s28, 0
      %p74 = por %p72, %p73
      %p75 = scmp.ne.s32.totalorder %s61, %s62
      %p76 = scmp.eq.s32.totalorder %s29, 1
      %p77 = por %p75, %p76
      %p79 = scmp.ne.s32.totalorder %s62, %s78
      %p80 = scmp.eq.s32.totalorder %s29, 0
      %p81 = por %p79, %p80
      %s83 = sadd.s32 %s82, 1
      %p86 = scmp.eq.s32.totalorder %s23, 1
      %p87 = scmp.ne.s32.totalorder %s82, %s84
      %p88 = scmp.eq.s32.totalorder %s23, 0
      %p89 = por %p87, %p88
      %p90 = scmp.ne.s32.totalorder %s82, %s84
      %p91 = scmp.eq.s32.totalorder %s28, 1
      %p92 = por %p90, %p91
      %p93 = scmp.ne.s32.totalorder %s84, %s85
      %p94 = scmp.eq.s32.totalorder %s28, 0
      %p95 = por %p93, %p94
      %p96 = scmp.ne.s32.totalorder %s84, %s85
      %p97 = scmp.eq.s32.totalorder %s29, 1
      %p98 = por %p96, %p97
      %p100 = scmp.ne.s32.totalorder %s85, %s99
      %p101 = scmp.eq.s32.totalorder %s29, 0
      %p102 = por %p100, %p101
      %s104 = sadd.s32 %s103, 1
      %p107 = scmp.eq.s32.totalorder %s23, 1
      %p108 = scmp.ne.s32.totalorder %s103, %s105
      %p109 = scmp.eq.s32.totalorder %s23, 0
      %p110 = por %p108, %p109
      %p111 = scmp.ne.s32.totalorder %s103, %s105
      %p112 = scmp.eq.s32.totalorder %s28, 1
      %p113 = por %p111, %p112
      %p114 = scmp.ne.s32.totalorder %s105, %s106
      %p115 = scmp.eq.s32.totalorder %s28, 0
      %p116 = por %p114, %p115
      %p117 = scmp.ne.s32.totalorder %s105, %s106
      %p118 = scmp.eq.s32.totalorder %s29, 1
      %p119 = por %p117, %p118
      %p121 = scmp.ne.s32.totalorder %s106, %s120
      %p122 = scmp.eq.s32.totalorder %s29, 0
      %p123 = por %p121, %p122
      %s124 = ssub.s32 %s23, 1
      %p125 = scmp.gt.s32.totalorder %s124, 0
      %s126 = scalar_select %p125, %s124, 0
      %s127 = ssub.s32 %s30, 1
      %p128 = scmp.gt.s32.totalorder %s127, 0
      %s129 = scalar_select %p128, %s127, 0
      %s130 = ssub.s32 %s126, %s129
      %p131 = scmp.eq.s32.totalorder %s130, 0
      %s133 = sadd.s32 %s132, 1
      %s134 = scalar_select %p131, %s132, %s133
      %p137 = pneg %p131
      %p138 = scmp.eq.s32.totalorder %s23, 1
      %p139 = por %p137, %p138
      %p140 = scmp.ne.s32.totalorder %s132, %s135
      %p141 = scmp.eq.s32.totalorder %s23, 0
      %p142 = por %p140, %p141
      %p143 = scmp.ne.s32.totalorder %s132, %s135
      %p144 = scmp.eq.s32.totalorder %s28, 1
      %p145 = por %p143, %p144
      %p146 = scmp.ne.s32.totalorder %s135, %s136
      %p147 = scmp.eq.s32.totalorder %s28, 0
      %p148 = por %p146, %p147
      %p149 = scmp.ne.s32.totalorder %s135, %s136
      %p150 = scmp.eq.s32.totalorder %s29, 1
      %p151 = por %p149, %p150
      %p153 = scmp.ne.s32.totalorder %s136, %s152
      %p154 = scmp.eq.s32.totalorder %s29, 0
      %p155 = por %p153, %p154
      %s157 = sadd.s32 %s156, 1
      %p160 = scmp.eq.s32.totalorder %s23, 1
      %p161 = scmp.ne.s32.totalorder %s156, %s158
      %p162 = scmp.eq.s32.totalorder %s23, 0
      %p163 = por %p161, %p162
      %p164 = scmp.ne.s32.totalorder %s156, %s158
      %p165 = scmp.eq.s32.totalorder %s28, 1
      %p166 = por %p164, %p165
      %p167 = scmp.ne.s32.totalorder %s158, %s159
      %p168 = scmp.eq.s32.totalorder %s28, 0
      %p169 = por %p167, %p168
      %p170 = scmp.ne.s32.totalorder %s158, %s159
      %p171 = scmp.eq.s32.totalorder %s29, 1
      %p172 = por %p170, %p171
      %p174 = scmp.ne.s32.totalorder %s159, %s173
      %p175 = scmp.eq.s32.totalorder %s29, 0
      %p176 = por %p174, %p175
      %s178 = sadd.s32 %s177, 1
      %p181 = scmp.eq.s32.totalorder %s23, 1
      %p182 = scmp.ne.s32.totalorder %s177, %s179
      %p183 = scmp.eq.s32.totalorder %s23, 0
      %p184 = por %p182, %p183
      %p185 = scmp.ne.s32.totalorder %s177, %s179
      %p186 = scmp.eq.s32.totalorder %s28, 1
      %p187 = por %p185, %p186
      %p188 = scmp.ne.s32.totalorder %s179, %s180
      %p189 = scmp.eq.s32.totalorder %s28, 0
      %p190 = por %p188, %p189
      %p191 = scmp.ne.s32.totalorder %s179, %s180
      %p192 = scmp.eq.s32.totalorder %s29, 1
      %p193 = por %p191, %p192
      %p195 = scmp.ne.s32.totalorder %s180, %s194
      %p196 = scmp.eq.s32.totalorder %s29, 0
      %p197 = por %p195, %p196
      %s198 = ssub.s32 %s23, 1
      %p199 = scmp.gt.s32.totalorder %s198, 0
      %s200 = scalar_select %p199, %s198, 0
      %s201 = ssub.s32 %s30, 1
      %p202 = scmp.gt.s32.totalorder %s201, 0
      %s203 = scalar_select %p202, %s201, 0
      %s204 = ssub.s32 %s200, %s203
      %p205 = scmp.eq.s32.totalorder %s204, 0
      %s207 = sadd.s32 %s206, 1
      %s208 = scalar_select %p205, %s206, %s207
      %p211 = pneg %p205
      %p212 = scmp.eq.s32.totalorder %s23, 1
      %p213 = por %p211, %p212
      %p214 = scmp.ne.s32.totalorder %s206, %s209
      %p215 = scmp.eq.s32.totalorder %s23, 0
      %p216 = por %p214, %p215
      %p217 = scmp.ne.s32.totalorder %s206, %s209
      %p218 = scmp.eq.s32.totalorder %s28, 1
      %p219 = por %p217, %p218
      %p220 = scmp.ne.s32.totalorder %s209, %s210
      %p221 = scmp.eq.s32.totalorder %s28, 0
      %p222 = por %p220, %p221
      %p223 = scmp.ne.s32.totalorder %s209, %s210
      %p224 = scmp.eq.s32.totalorder %s29, 1
      %p225 = por %p223, %p224
      %p227 = scmp.ne.s32.totalorder %s210, %s226
      %p228 = scmp.eq.s32.totalorder %s29, 0
      %p229 = por %p227, %p228
      %s231 = sadd.s32 %s230, 1
      %p234 = scmp.eq.s32.totalorder %s23, 1
      %p235 = scmp.ne.s32.totalorder %s230, %s232
      %p236 = scmp.eq.s32.totalorder %s23, 0
      %p237 = por %p235, %p236
      %p238 = scmp.ne.s32.totalorder %s230, %s232
      %p239 = scmp.eq.s32.totalorder %s28, 1
      %p240 = por %p238, %p239
      %p241 = scmp.ne.s32.totalorder %s232, %s233
      %p242 = scmp.eq.s32.totalorder %s28, 0
      %p243 = por %p241, %p242
      %p244 = scmp.ne.s32.totalorder %s232, %s233
      %p245 = scmp.eq.s32.totalorder %s29, 1
      %p246 = por %p244, %p245
      %p248 = scmp.ne.s32.totalorder %s233, %s247
      %p249 = scmp.eq.s32.totalorder %s29, 0
      %p250 = por %p248, %p249
      %s252 = sadd.s32 %s251, 1
      %p255 = scmp.eq.s32.totalorder %s23, 1
      %p256 = scmp.ne.s32.totalorder %s251, %s253
      %p257 = scmp.eq.s32.totalorder %s23, 0
      %p258 = por %p256, %p257
      %p259 = scmp.ne.s32.totalorder %s251, %s253
      %p260 = scmp.eq.s32.totalorder %s28, 1
      %p261 = por %p259, %p260
      %p262 = scmp.ne.s32.totalorder %s253, %s254
      %p263 = scmp.eq.s32.totalorder %s28, 0
      %p264 = por %p262, %p263
      %p265 = scmp.ne.s32.totalorder %s253, %s254
      %p266 = scmp.eq.s32.totalorder %s29, 1
      %p267 = por %p265, %p266
      %p269 = scmp.ne.s32.totalorder %s254, %s268
      %p270 = scmp.eq.s32.totalorder %s29, 0
      %p271 = por %p269, %p270
      %p272 = scmp.le.s32.totalorder 1, %s23
      %p273 = scmp.lt.s32.totalorder %s23, 3
      %p274 = pnand %p272, %p273
      %p275 = pneg %p274
      // Predicated region
      $region9: #{tpu_custom_call.1} parent=5 // pred_check
        _
      $region10: #{tpu_custom_call.1} parent=5 // pred_check_branch
        %277 = sbr.rel (%p274) target = $region12
      $region11: #{tpu_custom_call.1} parent=5 // pred_region
        %s278 = ssub.s32 %s23, 1
        // Predicated region
        $region13: #{tpu_custom_call.1} parent=11 // pred_check
          %p279 = pneg %p44
        $region14: #{tpu_custom_call.1} parent=11 // pred_check_branch
          %281 = sbr.rel (%p279) target = $region16
        $region15: #{tpu_custom_call.1} parent=11 // pred_region
          %283 = vsyncadd [#allocation5], 0
          %s285 = sshll.u32 %s0, 4
          %s286 = int_to_ptr.hbm [resolvable:$true] %s285
          %s287 = sshll.u32 [#allocation4], 4
          %s288 = int_to_ptr.vmem [resolvable:$true] %s287
          %290 = dma.hbm_to_vmem [thread:$0]  %s286, 64, %s288, [#allocation5]
        $region16: #{tpu_custom_call.1} parent=11 // pred_fallthru
          _
        // Predicated region
        $region17: #{tpu_custom_call.1} parent=11 // pred_check
          %p291 = pneg %p95
        $region18: #{tpu_custom_call.1} parent=11 // pred_check_branch
          %293 = sbr.rel (%p291) target = $region20
        $region19: #{tpu_custom_call.1} parent=11 // pred_region
          _
        $region20: #{tpu_custom_call.1} parent=11 // pred_fallthru
          _
        // Predicated region
        $region21: #{tpu_custom_call.1} parent=11 // pred_check
          %p294 = pneg %p116
        $region22: #{tpu_custom_call.1} parent=11 // pred_check_branch
          %296 = sbr.rel (%p294) target = $region24
        $region23: #{tpu_custom_call.1} parent=11 // pred_region
          _
        $region24: #{tpu_custom_call.1} parent=11 // pred_fallthru
          _
        // Predicated region
        $region25: #{tpu_custom_call.1} parent=11 // pred_check
          %p297 = pneg %p169
        $region26: #{tpu_custom_call.1} parent=11 // pred_check_branch
          %299 = sbr.rel (%p297) target = $region28
        $region27: #{tpu_custom_call.1} parent=11 // pred_region
          _
        $region28: #{tpu_custom_call.1} parent=11 // pred_fallthru
          _
        // Predicated region
        $region29: #{tpu_custom_call.1} parent=11 // pred_check
          %p300 = pneg %p190
        $region30: #{tpu_custom_call.1} parent=11 // pred_check_branch
          %302 = sbr.rel (%p300) target = $region32
        $region31: #{tpu_custom_call.1} parent=11 // pred_region
          _
        $region32: #{tpu_custom_call.1} parent=11 // pred_fallthru
          _
        // Predicated region
        $region33: #{tpu_custom_call.1} parent=11 // pred_check
          %p303 = pneg %p243
        $region34: #{tpu_custom_call.1} parent=11 // pred_check_branch
          %305 = sbr.rel (%p303) target = $region36
        $region35: #{tpu_custom_call.1} parent=11 // pred_region
          _
        $region36: #{tpu_custom_call.1} parent=11 // pred_fallthru
          _
      $region12: #{tpu_custom_call.1} parent=5 // pred_fallthru
        _
      %p306 = scmp.lt.s32.totalorder %s23, 2
      // Predicated region
      $region37: #{tpu_custom_call.1} parent=5 // pred_check
        %p307 = pneg %p306
      $region38: #{tpu_custom_call.1} parent=5 // pred_check_branch
        %309 = sbr.rel (%p307) target = $region40
      $region39: #{tpu_custom_call.1} parent=5 // pred_region
        // Predicated region
        $region41: #{tpu_custom_call.1} parent=39 // pred_check
          %p310 = pneg %p68
        $region42: #{tpu_custom_call.1} parent=39 // pred_check_branch
          %312 = sbr.rel (%p310) target = $region44
        $region43: #{tpu_custom_call.1} parent=39 // pred_region
          %s313 = sand.u32 %s23, 1
          %s314 = scalar_lea.sflag [#allocation8], %s313
          %s315 = sand.u32 %s58, 1
          %s316 = smul.addr %s315, 16
          %s317 = scalar_lea.vmem [#allocation7], %s316
          %p318 = scmp.lt.s32.totalorder %s23, 0
          %s319 = scalar_select %p318, %s23, 0
          %321 = vsyncadd %s314, 0
          %s322 = smul.addr %s319, 4
          %s323 = scalar_lea.hbm %s1, %s322
          %s324 = sshll.u32 %s323, 4
          %s325 = int_to_ptr.hbm [resolvable:$true] %s324
          %s326 = sshll.u32 %s317, 4
          %s327 = int_to_ptr.vmem [resolvable:$true] %s326
          %332 = dma.hbm_to_vmem [thread:$0]  %s325, 256, %s327, %s314, 64, 64, 4
        $region44: #{tpu_custom_call.1} parent=39 // pred_fallthru
          _
        // Predicated region
        $region45: #{tpu_custom_call.1} parent=39 // pred_check
          %p333 = pneg %p142
        $region46: #{tpu_custom_call.1} parent=39 // pred_check_branch
          %335 = sbr.rel (%p333) target = $region48
        $region47: #{tpu_custom_call.1} parent=39 // pred_region
          %s336 = sand.u32 %s23, 1
          %s337 = scalar_lea.sflag [#allocation8], %s336
          %s338 = sand.u32 %s132, 1
          %s339 = smul.addr %s338, 64
          %s340 = scalar_lea.vmem [#allocation9], %s339
          %s341 = ssub.s32 %s23, 1
          %p342 = scmp.gt.s32.totalorder %s341, 0
          %s343 = scalar_select %p342, %s341, 0
          %345 = vsyncadd %s337, 0
          %s346 = smul.addr %s343, 4
          %s347 = scalar_lea.hbm %s4, %s346
          %s348 = sshll.u32 %s347, 4
          %s349 = int_to_ptr.hbm [resolvable:$true] %s348
          %s350 = sshll.u32 %s340, 4
          %s351 = int_to_ptr.vmem [resolvable:$true] %s350
          %356 = dma.hbm_to_vmem [thread:$0]  %s349, 1024, %s351, %s337, 64, 64, 4
        $region48: #{tpu_custom_call.1} parent=39 // pred_fallthru
          _
        // Predicated region
        $region49: #{tpu_custom_call.1} parent=39 // pred_check
          %p357 = pneg %p216
        $region50: #{tpu_custom_call.1} parent=39 // pred_check_branch
          %359 = sbr.rel (%p357) target = $region52
        $region51: #{tpu_custom_call.1} parent=39 // pred_region
          %s360 = sand.u32 %s206, 1
          %s361 = scalar_lea.sflag [#allocation11], %s360
          %s362 = sand.u32 %s206, 1
          %s363 = smul.addr %s362, 64
          %s364 = scalar_lea.vmem [#allocation10], %s363
          %s365 = ssub.s32 %s23, 1
          %p366 = scmp.gt.s32.totalorder %s365, 0
          %s367 = scalar_select %p366, %s365, 0
          %s368 = smul.u32 16, %s367
          %370 = vsyncadd %s361, 0
          %s371 = smul.addr %s368, 4
          %s372 = scalar_lea.hbm %s7, %s371
          %s373 = sshll.u32 %s372, 4
          %s374 = int_to_ptr.hbm [resolvable:$true] %s373
          %s375 = sshll.u32 %s364, 4
          %s376 = int_to_ptr.vmem [resolvable:$true] %s375
          %381 = dma.hbm_to_vmem [thread:$0]  %s374, 1024, %s376, %s361, 64, 64, 4
        $region52: #{tpu_custom_call.1} parent=39 // pred_fallthru
          _
      $region40: #{tpu_custom_call.1} parent=5 // pred_fallthru
        _
      %p382 = scmp.le.s32.totalorder 1, %s23
      %p383 = scmp.lt.s32.totalorder %s23, 3
      %p384 = pnand %p382, %p383
      %p385 = pneg %p384
      // Predicated region
      $region53: #{tpu_custom_call.1} parent=5 // pred_check
        _
      $region54: #{tpu_custom_call.1} parent=5 // pred_check_branch
        %387 = sbr.rel (%p384) target = $region56
      $region55: #{tpu_custom_call.1} parent=5 // pred_region
        %s388 = ssub.s32 %s23, 1
        // Predicated region
        $region57: #{tpu_custom_call.1} parent=55 // pred_check
          %p389 = pneg %p44
        $region58: #{tpu_custom_call.1} parent=55 // pred_check_branch
          %391 = sbr.rel (%p389) target = $region60
        $region59: #{tpu_custom_call.1} parent=55 // pred_region
          %393 = dma.done [#allocation5], 64
        $region60: #{tpu_custom_call.1} parent=55 // pred_fallthru
          _
        %s394 = sand.u32 %s28, 1
        %s395 = scalar_lea.sflag [#allocation8], %s394
        %s396 = sand.u32 %s61, 1
        %s397 = smul.addr %s396, 16
        %s398 = scalar_lea.vmem [#allocation7], %s397
        // Predicated region
        $region61: #{tpu_custom_call.1} parent=55 // pred_check
          %p399 = pneg %p74
        $region62: #{tpu_custom_call.1} parent=55 // pred_check_branch
          %401 = sbr.rel (%p399) target = $region64
        $region63: #{tpu_custom_call.1} parent=55 // pred_region
          %403 = dma.done %s395, 256
        $region64: #{tpu_custom_call.1} parent=55 // pred_fallthru
          _
        %s404 = sand.u32 %s28, 1
        %s405 = scalar_lea.sflag [#allocation8], %s404
        %s406 = sand.u32 %s135, 1
        %s407 = smul.addr %s406, 64
        %s408 = scalar_lea.vmem [#allocation9], %s407
        // Predicated region
        $region65: #{tpu_custom_call.1} parent=55 // pred_check
          %p409 = pneg %p148
        $region66: #{tpu_custom_call.1} parent=55 // pred_check_branch
          %411 = sbr.rel (%p409) target = $region68
        $region67: #{tpu_custom_call.1} parent=55 // pred_region
          %413 = dma.done %s405, 1024
        $region68: #{tpu_custom_call.1} parent=55 // pred_fallthru
          _
        %s414 = sand.u32 %s209, 1
        %s415 = scalar_lea.sflag [#allocation11], %s414
        %s416 = sand.u32 %s209, 1
        %s417 = smul.addr %s416, 64
        %s418 = scalar_lea.vmem [#allocation10], %s417
        // Predicated region
        $region69: #{tpu_custom_call.1} parent=55 // pred_check
          %p419 = pneg %p222
        $region70: #{tpu_custom_call.1} parent=55 // pred_check_branch
          %421 = sbr.rel (%p419) target = $region72
        $region71: #{tpu_custom_call.1} parent=55 // pred_region
          %423 = dma.done %s415, 1024
        $region72: #{tpu_custom_call.1} parent=55 // pred_fallthru
          _
        %p424 = pneg %p44
        %p425 = pneg %p41
        %s426 = sand.u32 %s28, 1
        %s427 = scalar_lea.sflag [#allocation8], %s426
        %s428 = sand.u32 %s61, 1
        %s429 = smul.addr %s428, 16
        %s430 = scalar_lea.vmem [#allocation7], %s429
        %p431 = pneg %p74
        %p432 = pneg %p71
        %p433 = pneg %p95
        %p434 = pneg %p92
        %p435 = pneg %p116
        %p436 = pneg %p113
        %s437 = sand.u32 %s28, 1
        %s438 = scalar_lea.sflag [#allocation8], %s437
        %s439 = sand.u32 %s135, 1
        %s440 = smul.addr %s439, 64
        %s441 = scalar_lea.vmem [#allocation9], %s440
        %p442 = pneg %p148
        %p443 = pneg %p145
        %p444 = pneg %p169
        %p445 = pneg %p166
        %p446 = pneg %p190
        %p447 = pneg %p187
        %s448 = sand.u32 %s209, 1
        %s449 = scalar_lea.sflag [#allocation11], %s448
        %s450 = sand.u32 %s209, 1
        %s451 = smul.addr %s450, 64
        %s452 = scalar_lea.vmem [#allocation10], %s451
        %p453 = pneg %p222
        %p454 = pneg %p219
        %p455 = pneg %p243
        %p456 = pneg %p240
        %p457 = pneg %p264
        %p458 = pneg %p261
        %p459 = scmp.lt.s32.totalorder %s28, 0
        %s460 = scalar_select %p459, %s28, 0
        %s461 = ssub.s32 %s28, 1
        %p462 = scmp.gt.s32.totalorder %s461, 0
        %s463 = scalar_select %p462, %s461, 0
        %s464 = ssub.s32 %s28, 1
        %p465 = scmp.gt.s32.totalorder %s464, 0
        %s466 = scalar_select %p465, %s464, 0
        %s467 = smul.u32 16, %s466
        %p469 = scmp.lt.s32.totalorder %s28, 1
        // Predicated region
        $region73: #{tpu_custom_call.1} parent=55 // pred_check
          %p470 = pneg %p469
        $region74: #{tpu_custom_call.1} parent=55 // pred_check_branch
          %472 = sbr.rel (%p470) target = $region76
        $region75: #{tpu_custom_call.1} parent=55 // pred_region
          %s473 = smul.u32 %s28, 128
          %v474 = vld [vmem:[#allocation4] sm:$0xf]
          %v475 = vld [vmem:[%s398] sm:$0xf]
          %v476 = vld [vmem:[%s398 + $0x4] sm:$0xf]
          %v477 = vld [vmem:[%s398 + $0x8] sm:$0xf]
          %v478 = vld [vmem:[%s398 + $0xc] sm:$0xf]
          %v483 = vunpack.c.l.b16 %v475
          %v484 = vunpack.c.l.b16 %v476
          %v485 = vunpack.c.l.b16 %v477
          %v486 = vunpack.c.l.b16 %v478
          %v487 = vpack.c.b16 %v484, %v483
          %v488 = vpack.c.b16 %v486, %v485
          %vm491 = vcmask 261120
          %v493 = vsel %vm491, %v474, 0
          %495 = vmatpush.bf16.msra.mxu0 0
          %496 = vmatpush.bf16.msra.mxu0 0
          %497 = vmatpush.bf16.msra.mxu0 0
          %498 = vmatpush.bf16.msra.mxu0 0
          %499 = vmatpush.bf16.msra.mxu0 0
          %500 = vmatpush.bf16.msra.mxu0 0
          %501 = vmatpush.bf16.msra.mxu0 %v488
          %502 = vmatpush.bf16.msra.mxu0 %v487
          %503 = vmatmul.bf16.gmra.mxu0 %v493
          %v504 = vpop.f32.mrf.mxu0
          %v505 = vadd.f32 0.0, %v504
          %v506 = vpop.f32.mrf.mxu0
          %507 = vdwg.mxu0
          %v508 = vrot.slane %v505, 4
          %v509 = vadd.f32 %v505, %v508
          %v510 = vrot.slane %v509, 2
          %v511 = vadd.f32 %v509, %v510
          %v512 = vrot.slane %v511, 1
          %v513 = vadd.f32 %v511, %v512
          %v514 = vrcp.pop 8.0
          %v515 = vmul.f32 8.0, %v514
          %v516 = vsub.f32 1.0, %v515
          %v517 = vmul.f32 %v514, %v516
          %v518 = vadd.f32 %v514, %v517
          %vm519 = vweird.f32 %v514
          %v520 = vsel %vm519, %v514, %v518
          %v521 = vmul.f32 %v513, %v520
          %v522 = vsub.f32 %v505, %v521
          %v523 = vmul.f32 %v522, %v522
          %v524 = vrot.slane %v523, 4
          %v525 = vadd.f32 %v523, %v524
          %v526 = vrot.slane %v525, 2
          %v527 = vadd.f32 %v525, %v526
          %v528 = vrot.slane %v527, 1
          %v529 = vadd.f32 %v527, %v528
          %v530 = vmul.f32 %v529, %v520
          %s531 = sshra.s32 %s473, 7
          %s532 = sand.u32 %s473, 127
          %s533 = scalar_lea.vmem %s2, %s531
          %v534 = vld [vmem:[%s533] sm:$0x1]
          %v535 = vadd.f32 %v530, 1e-05
          %v536 = vrsqrt.pop %v535
          %v537 = vmul.f32 %v536, %v535
          %v538 = vmul.f32 %v537, %v536
          %v539 = vmul.f32 0.5, %v538
          %v540 = vsub.f32 1.5, %v539
          %v541 = vmul.f32 %v536, %v540
          %vm542 = vweird.f32 %v535
          %vm543 = vweird.f32 %v536
          %vm544 = vmor %vm542, %vm543
          %v545 = vsel %vm544, %v536, %v541
          %v546 = vmul.f32 %v534, %v545
          %s547 = scalar_lea.vmem %s3, %s531
          %v548 = vld [vmem:[%s547] sm:$0x1]
          %v549 = vmul.f32 %v521, %v546
          %v550 = vsub.f32 %v548, %v549
          %v552 = vperm.slane %v546, 0
          %v554 = vmul.f32 %v505, %v552
          %v556 = vperm.slane %v550, 0
          %v558 = vadd.f32 %v554, %v556
          %v559 = vmax.f32 %v558, 0.0
          %v560 = vpack.c.bf16 %v559, %v559
          %s561 = smul.addr %s531, 4
          %s562 = scalar_lea.vmem [#allocation2], %s561
          %563 = vst [vmem:[%s562] sm:$0xf] %v560
        $region76: #{tpu_custom_call.1} parent=55 // pred_fallthru
          _
        %p564 = scmp.ge.s32.totalorder %s28, 1
        // Predicated region
        $region77: #{tpu_custom_call.1} parent=55 // pred_check
          %p565 = pneg %p564
        $region78: #{tpu_custom_call.1} parent=55 // pred_check_branch
          %567 = sbr.rel (%p565) target = $region80
        $region79: #{tpu_custom_call.1} parent=55 // pred_region
          %s568 = ssub.s32 %s28, 1
          %s569 = smul.u32 %s568, 128
          %v570 = vld [vmem:[#allocation2] sm:$0xf]
          %v571 = vld [vmem:[%s408] sm:$0xf]
          %v572 = vld [vmem:[%s408 + $0x4] sm:$0xf]
          %v573 = vld [vmem:[%s408 + $0x8] sm:$0xf]
          %v574 = vld [vmem:[%s408 + $0xc] sm:$0xf]
          %v575 = vld [vmem:[%s408 + $0x10] sm:$0xf]
          %v576 = vld [vmem:[%s408 + $0x14] sm:$0xf]
          %v577 = vld [vmem:[%s408 + $0x18] sm:$0xf]
          %v578 = vld [vmem:[%s408 + $0x1c] sm:$0xf]
          %v579 = vld [vmem:[%s408 + $0x20] sm:$0xf]
          %v580 = vld [vmem:[%s408 + $0x24] sm:$0xf]
          %v581 = vld [vmem:[%s408 + $0x28] sm:$0xf]
          %v582 = vld [vmem:[%s408 + $0x2c] sm:$0xf]
          %v583 = vld [vmem:[%s408 + $0x30] sm:$0xf]
          %v584 = vld [vmem:[%s408 + $0x34] sm:$0xf]
          %v585 = vld [vmem:[%s408 + $0x38] sm:$0xf]
          %v586 = vld [vmem:[%s408 + $0x3c] sm:$0xf]
          %v603 = vunpack.c.l.b16 %v571
          %v604 = vunpack.c.l.b16 %v572
          %v605 = vunpack.c.l.b16 %v573
          %v606 = vunpack.c.l.b16 %v574
          %v607 = vunpack.c.l.b16 %v575
          %v608 = vunpack.c.l.b16 %v576
          %v609 = vunpack.c.l.b16 %v577
          %v610 = vunpack.c.l.b16 %v578
          %v611 = vunpack.c.l.b16 %v579
          %v612 = vunpack.c.l.b16 %v580
          %v613 = vunpack.c.l.b16 %v581
          %v614 = vunpack.c.l.b16 %v582
          %v615 = vunpack.c.l.b16 %v583
          %v616 = vunpack.c.l.b16 %v584
          %v617 = vunpack.c.l.b16 %v585
          %v618 = vunpack.c.l.b16 %v586
          %v619 = vpack.c.b16 %v604, %v603
          %v620 = vpack.c.b16 %v606, %v605
          %v621 = vpack.c.b16 %v608, %v607
          %v622 = vpack.c.b16 %v610, %v609
          %v623 = vpack.c.b16 %v612, %v611
          %v624 = vpack.c.b16 %v614, %v613
          %v625 = vpack.c.b16 %v616, %v615
          %v626 = vpack.c.b16 %v618, %v617
          %635 = vmatpush.bf16.msra.mxu0 %v626
          %636 = vmatpush.bf16.msra.mxu0 %v625
          %637 = vmatpush.bf16.msra.mxu0 %v624
          %638 = vmatpush.bf16.msra.mxu0 %v623
          %639 = vmatpush.bf16.msra.mxu0 %v622
          %640 = vmatpush.bf16.msra.mxu0 %v621
          %641 = vmatpush.bf16.msra.mxu0 %v620
          %642 = vmatpush.bf16.msra.mxu0 %v619
          %643 = vmatmul.bf16.gmra.mxu0 %v570
          %v644 = vpop.f32.mrf.mxu0
          %v645 = vadd.f32 0.0, %v644
          %v646 = vpop.f32.mrf.mxu0
          %647 = vdwg.mxu0
          %v648 = vrot.slane %v645, 4
          %v649 = vadd.f32 %v645, %v648
          %v650 = vrot.slane %v649, 2
          %v651 = vadd.f32 %v649, %v650
          %v652 = vrot.slane %v651, 1
          %v653 = vadd.f32 %v651, %v652
          %v654 = vrcp.pop 8.0
          %v655 = vmul.f32 8.0, %v654
          %v656 = vsub.f32 1.0, %v655
          %v657 = vmul.f32 %v654, %v656
          %v658 = vadd.f32 %v654, %v657
          %vm659 = vweird.f32 %v654
          %v660 = vsel %vm659, %v654, %v658
          %v661 = vmul.f32 %v653, %v660
          %v662 = vsub.f32 %v645, %v661
          %v663 = vmul.f32 %v662, %v662
          %v664 = vrot.slane %v663, 4
          %v665 = vadd.f32 %v663, %v664
          %v666 = vrot.slane %v665, 2
          %v667 = vadd.f32 %v665, %v666
          %v668 = vrot.slane %v667, 1
          %v669 = vadd.f32 %v667, %v668
          %v670 = vmul.f32 %v669, %v660
          %s671 = sshra.s32 %s569, 7
          %s672 = sand.u32 %s569, 127
          %s673 = scalar_lea.vmem %s5, %s671
          %v674 = vld [vmem:[%s673] sm:$0x1]
          %v675 = vadd.f32 %v670, 1e-05
          %v676 = vrsqrt.pop %v675
          %v677 = vmul.f32 %v676, %v675
          %v678 = vmul.f32 %v677, %v676
          %v679 = vmul.f32 0.5, %v678
          %v680 = vsub.f32 1.5, %v679
          %v681 = vmul.f32 %v676, %v680
          %vm682 = vweird.f32 %v675
          %vm683 = vweird.f32 %v676
          %vm684 = vmor %vm682, %vm683
          %v685 = vsel %vm684, %v676, %v681
          %v686 = vmul.f32 %v674, %v685
          %s687 = scalar_lea.vmem %s6, %s671
          %v688 = vld [vmem:[%s687] sm:$0x1]
          %v689 = vmul.f32 %v661, %v686
          %v690 = vsub.f32 %v688, %v689
          %v692 = vperm.slane %v686, 0
          %v694 = vmul.f32 %v645, %v692
          %v696 = vperm.slane %v690, 0
          %v698 = vadd.f32 %v694, %v696
          %v699 = vmax.f32 %v698, 0.0
          %v700 = vpack.c.bf16 %v699, %v699
          %v701 = vld [vmem:[%s418] sm:$0xf]
          %v702 = vld [vmem:[%s418 + $0x4] sm:$0xf]
          %v703 = vld [vmem:[%s418 + $0x8] sm:$0xf]
          %v704 = vld [vmem:[%s418 + $0xc] sm:$0xf]
          %v705 = vld [vmem:[%s418 + $0x10] sm:$0xf]
          %v706 = vld [vmem:[%s418 + $0x14] sm:$0xf]
          %v707 = vld [vmem:[%s418 + $0x18] sm:$0xf]
          %v708 = vld [vmem:[%s418 + $0x1c] sm:$0xf]
          %v709 = vld [vmem:[%s418 + $0x20] sm:$0xf]
          %v710 = vld [vmem:[%s418 + $0x24] sm:$0xf]
          %v711 = vld [vmem:[%s418 + $0x28] sm:$0xf]
          %v712 = vld [vmem:[%s418 + $0x2c] sm:$0xf]
          %v713 = vld [vmem:[%s418 + $0x30] sm:$0xf]
          %v714 = vld [vmem:[%s418 + $0x34] sm:$0xf]
          %v715 = vld [vmem:[%s418 + $0x38] sm:$0xf]
          %v716 = vld [vmem:[%s418 + $0x3c] sm:$0xf]
          %v733 = vunpack.c.l.b16 %v701
          %v734 = vunpack.c.l.b16 %v702
          %v735 = vunpack.c.l.b16 %v703
          %v736 = vunpack.c.l.b16 %v704
          %v737 = vunpack.c.l.b16 %v705
          %v738 = vunpack.c.l.b16 %v706
          %v739 = vunpack.c.l.b16 %v707
          %v740 = vunpack.c.l.b16 %v708
          %v741 = vunpack.c.l.b16 %v709
          %v742 = vunpack.c.l.b16 %v710
          %v743 = vunpack.c.l.b16 %v711
          %v744 = vunpack.c.l.b16 %v712
          %v745 = vunpack.c.l.b16 %v713
          %v746 = vunpack.c.l.b16 %v714
          %v747 = vunpack.c.l.b16 %v715
          %v748 = vunpack.c.l.b16 %v716
          %v749 = vpack.c.b16 %v734, %v733
          %v750 = vpack.c.b16 %v736, %v735
          %v751 = vpack.c.b16 %v738, %v737
          %v752 = vpack.c.b16 %v740, %v739
          %v753 = vpack.c.b16 %v742, %v741
          %v754 = vpack.c.b16 %v744, %v743
          %v755 = vpack.c.b16 %v746, %v745
          %v756 = vpack.c.b16 %v748, %v747
          %765 = vmatpush.bf16.msra.mxu0 %v756
          %766 = vmatpush.bf16.msra.mxu0 %v755
          %767 = vmatpush.bf16.msra.mxu0 %v754
          %768 = vmatpush.bf16.msra.mxu0 %v753
          %769 = vmatpush.bf16.msra.mxu0 %v752
          %770 = vmatpush.bf16.msra.mxu0 %v751
          %771 = vmatpush.bf16.msra.mxu0 %v750
          %772 = vmatpush.bf16.msra.mxu0 %v749
          %773 = vmatmul.bf16.gmra.mxu0 %v700
          %v774 = vpop.f32.mrf.mxu0
          %v775 = vadd.f32 0.0, %v774
          %v776 = vpop.f32.mrf.mxu0
          %777 = vdwg.mxu0
          %p778 = scmp.eq.s32.totalorder %s568, 0
          // Predicated region
          $region81: #{tpu_custom_call.1} parent=79 // pred_check
            %p779 = pneg %p778
          $region82: #{tpu_custom_call.1} parent=79 // pred_check_branch
            %781 = sbr.rel (%p779) target = $region84
          $region83: #{tpu_custom_call.1} parent=79 // pred_region
            %v782 = vld [vmem:[%s8] sm:$0x1]
            %v784 = vperm.slane %v782, 0
            %v786 = vadd.f32 %v775, %v784
            %787 = vst [vmem:[#allocation3] sm:$0xff] %v786
          $region84: #{tpu_custom_call.1} parent=79 // pred_fallthru
            _
          %p788 = scmp.gt.s32.totalorder %s568, 0
          // Predicated region
          $region85: #{tpu_custom_call.1} parent=79 // pred_check
            %p789 = pneg %p788
          $region86: #{tpu_custom_call.1} parent=79 // pred_check_branch
            %791 = sbr.rel (%p789) target = $region88
          $region87: #{tpu_custom_call.1} parent=79 // pred_region
            %v792 = vld [vmem:[#allocation3] sm:$0xff]
            %v793 = vadd.f32 %v792, %v775
            %794 = vst [vmem:[#allocation3] sm:$0xff] %v793
          $region88: #{tpu_custom_call.1} parent=79 // pred_fallthru
            _
          %p795 = scmp.eq.s32.totalorder %s28, 1
          // Predicated region
          $region89: #{tpu_custom_call.1} parent=79 // pred_check
            %p796 = pneg %p795
          $region90: #{tpu_custom_call.1} parent=79 // pred_check_branch
            %798 = sbr.rel (%p796) target = $region92
          $region91: #{tpu_custom_call.1} parent=79 // pred_region
            %v799 = vld [vmem:[#allocation3] sm:$0xff]
            %800 = vst [vmem:[#allocation12] sm:$0xff] %v799
          $region92: #{tpu_custom_call.1} parent=79 // pred_fallthru
            _
        $region80: #{tpu_custom_call.1} parent=55 // pred_fallthru
          _
        // Predicated region
        $region93: #{tpu_custom_call.1} parent=55 // pred_check
          %p801 = pneg %p261
        $region94: #{tpu_custom_call.1} parent=55 // pred_check_branch
          %803 = sbr.rel (%p801) target = $region96
        $region95: #{tpu_custom_call.1} parent=55 // pred_region
          %805 = vsyncadd [#allocation6], 0
          %s807 = sshll.u32 [#allocation12], 4
          %s808 = int_to_ptr.vmem [resolvable:$true] %s807
          %s809 = sshll.u32 %s9, 4
          %s810 = int_to_ptr.hbm [resolvable:$true] %s809
          %812 = dma.vmem_to_hbm [thread:$0]  %s808, 128, %s810, [#allocation6]
        $region96: #{tpu_custom_call.1} parent=55 // pred_fallthru
          _
        // Predicated region
        $region97: #{tpu_custom_call.1} parent=55 // pred_check
          %p813 = pneg %p261
        $region98: #{tpu_custom_call.1} parent=55 // pred_check_branch
          %815 = sbr.rel (%p813) target = $region100
        $region99: #{tpu_custom_call.1} parent=55 // pred_region
          %817 = dma.done [#allocation6], 128
        $region100: #{tpu_custom_call.1} parent=55 // pred_fallthru
          _
      $region56: #{tpu_custom_call.1} parent=5 // pred_fallthru
        _
      %p818 = scmp.le.s32.totalorder 2, %s23
      // Predicated region
      $region101: #{tpu_custom_call.1} parent=5 // pred_check
        %p819 = pneg %p818
      $region102: #{tpu_custom_call.1} parent=5 // pred_check_branch
        %821 = sbr.rel (%p819) target = $region104
      $region103: #{tpu_custom_call.1} parent=5 // pred_region
        %s822 = ssub.s32 %s23, 2
      $region104: #{tpu_custom_call.1} parent=5 // pred_fallthru
        _
    $region6: #{tpu_custom_call.1} parent=1 // loop_footer
      %s27 = sadd.s32 1, %s23
    $region7: #{tpu_custom_call.1} parent=1 // loop_footer_branch
      %22 = sbr.rel target = $region3
    $region8: #{tpu_custom_call.1} parent=1 // loop_exit
      _
    %823 = vsyncpa [#allocation5], 1
    %s824 = scalar_lea.sflag [#allocation5], 1
    %825 = vsyncpa %s824, 1
    %826 = vsyncpa [#allocation8], 1
    %s827 = scalar_lea.sflag [#allocation8], 1
    %828 = vsyncpa %s827, 1
    %829 = vsyncpa [#allocation11], 1
    %s830 = scalar_lea.sflag [#allocation11], 1
    %831 = vsyncpa %s830, 1
    %832 = vsyncpa [#allocation6], 1
    %s833 = scalar_lea.sflag [#allocation6], 1
    %834 = vsyncpa %s833, 1

</llo_original>
